<compile_context>
chip_gen: v5e
topology: v5e:2x2
jax: 0.10.0
libtpu: 0.0.40
codegen_flags: <defaults>
</compile_context>

<pallas_src>
import functools

import jax
import jax.numpy as jnp
from jax import lax
from jax.experimental import pallas as pl
from jax.experimental.pallas import tpu as pltpu

_COMPUTE_DTYPE = jnp.bfloat16          # MXU operand dtype (accumulation stays float32)


# ----------------------------------------------------------------------------------
# In-kernel math helpers (only ops guaranteed to lower on the TPU/Mosaic backend).
# ----------------------------------------------------------------------------------
def _erf_f32(x):
    """float32 erf via the Eigen/XLA rational approximation (|err| ~ 1e-7).

    The final divide goes through the EUP approx reciprocal (free slot) instead of the
    VALU f32 divide; the ~2e-4 relative error is far below the erf budget here.
    """
    x = jnp.clip(x, -4.0, 4.0)
    x2 = x * x
    alphas = (-2.72614225801306e-10, 2.77068142495902e-08, -2.10102402082508e-06,
              -5.69250639462346e-05, -7.34990630326855e-04, -2.95459980854025e-03,
              -1.60960333262415e-02)
    betas = (-1.45660718464996e-05, -2.13374055278905e-04, -1.68282697438203e-03,
             -7.37332916720468e-03, -1.42647390514189e-02)
    p = jnp.float32(alphas[0])
    for a in alphas[1:]:
        p = p * x2 + jnp.float32(a)
    p = p * x
    q = jnp.float32(betas[0])
    for b in betas[1:]:
        q = q * x2 + jnp.float32(b)
    return p * pl.reciprocal(q, approx=True)


def _gelu_times_two(x):
    # 2 * GELU_exact(x) = x * (1 + erf(x / sqrt(2))); the 0.5 is folded into w2.
    return x * (1.0 + _erf_f32(x * jnp.float32(0.7071067811865476)))


def _layer_norm(x, w, b, eps=1e-5):
    mu = jnp.mean(x, axis=-1, keepdims=True)
    var = jnp.mean(jnp.square(x - mu), axis=-1, keepdims=True)
    return (x - mu) * lax.rsqrt(var + eps) * w + b


# ----------------------------------------------------------------------------------
# Pallas kernel: the full encoder stack for one batch tile.
# Grid = (batch_tiles, num_layers); the layer axis carries the activation in act_ref.
# ----------------------------------------------------------------------------------
def encoder_stack_kernel(x_ref, ln0w_ref, ln0b_ref, wqkv_ref, wproj_ref, bproj_ref,
                         ln1w_ref, ln1b_ref, w1_ref, b1_ref, w2_ref, b2_ref,
                         o_ref, act_ref, ocat_ref, *, num_heads, batch_tile, seq_len):
    H, Bt, N = num_heads, batch_tile, seq_len
    C = x_ref.shape[-1]
    hd = C // H
    M = Bt * N                          # batch folded into the matmul M dimension
    G = H * Bt                          # batch dim of the attention dot_generals
    layer = pl.program_id(1)

    # ---- load the input activation into the layer-carry scratch on the first layer ----
    @pl.when(layer == 0)
    def _():
        act_ref[...] = x_ref[...].reshape(M, C).astype(jnp.float32)

    x = act_ref[...]                    # (M, C) f32, resident across the layer axis

    # ---- pre_norm + QKV projection (1/sqrt(hd) scale pre-folded into Q columns) ----
    xn = _layer_norm(x, ln0w_ref[...], ln0b_ref[...])
    qkv = jnp.dot(xn.astype(_COMPUTE_DTYPE), wqkv_ref[...],
                  preferred_element_type=jnp.float32)                       # (M, 3C)
    qkv = qkv.astype(_COMPUTE_DTYPE)    # cast BEFORE the head relayout (halves copied bytes)

    # head-major rearrangement in bf16: (M, 3C) -> (3H, M, hd) -> three (G, N, hd) operands
    qkvh = jnp.stack([qkv[:, g * hd:(g + 1) * hd] for g in range(3 * H)], axis=0)
    q = qkvh[0:H].reshape(G, N, hd)
    k = qkvh[H:2 * H].reshape(G, N, hd)
    v = qkvh[2 * H:3 * H].reshape(G, N, hd)

    # ---- attention, batched over (batch * heads) ----
    s = lax.dot_general(q, k, (((2,), (2,)), ((0,), (0,))),
                        preferred_element_type=jnp.float32)                 # (G, N, N)
    s = s - jnp.max(s, axis=-1, keepdims=True)
    e = jnp.exp(s)
    p = e * pl.reciprocal(jnp.sum(e, axis=-1, keepdims=True), approx=True)
    o = lax.dot_general(p.astype(_COMPUTE_DTYPE), v, (((2,), (1,)), ((0,), (0,))),
                        preferred_element_type=jnp.float32)                 # (G, N, hd)

    # ---- merge heads back to (M, C) via static lane-slice stores (bf16 staging buffer),
    #      then a single full-K output projection matmul ----
    o3 = o.astype(_COMPUTE_DTYPE).reshape(H, M, hd)
    for h in range(H):
        ocat_ref[:, h * hd:(h + 1) * hd] = o3[h]
    attn = jnp.dot(ocat_ref[...], wproj_ref[...],
                   preferred_element_type=jnp.float32) + bproj_ref[...]     # (M, C)

    # ---- residual + norm1 (dropout / drop_path are inference identities) ----
    src = x + attn
    src = _layer_norm(src, ln1w_ref[...], ln1b_ref[...])

    # ---- MLP (GELU 0.5 factor is folded into w2 at trace time) ----
    h1 = jnp.dot(src.astype(_COMPUTE_DTYPE), w1_ref[...],
                 preferred_element_type=jnp.float32) + b1_ref[...]
    h1 = _gelu_times_two(h1)
    h2 = jnp.dot(h1.astype(_COMPUTE_DTYPE), w2_ref[...],
                 preferred_element_type=jnp.float32) + b2_ref[...]

    out = src + h2
    act_ref[...] = out                  # carry to the next layer (stays in VMEM)

    @pl.when(layer == pl.num_programs(1) - 1)
    def _():
        o_ref[...] = out.reshape(Bt, N, C).astype(o_ref.dtype)


# ----------------------------------------------------------------------------------
# Wrapper: trace-time parameter prep + pallas_call.
# ----------------------------------------------------------------------------------
def _pick_batch_tile(B, N, m_cap=1024):
    """Fold batch rows into the matmul M dim, but keep >=2 grid steps on the batch axis
    when B >= 2 so the v7x megacore 'parallel' axis has work for both TensorCores."""
    if N % 8 != 0:
        return 1
    max_d = B if B == 1 else B // 2
    best = 1
    for d in range(1, max_d + 1):
        if B % d == 0 and d * N <= m_cap:
            best = d
    return best


def _vmem_limit_bytes():
    """Generation-aware scoped-VMEM limit: ~96 MiB on v5e/v6e (128 MiB), ~48 MiB on v7x."""
    try:
        cap = int(pltpu.get_tpu_info().vmem_capacity_bytes)
    except Exception:
        cap = 64 * 1024 * 1024
    return int(min(100 * 1024 * 1024, (cap * 3) // 4))


def _prep_layer_params(p, num_heads):
    C = p["w_qkv"].shape[0]
    hd = C // num_heads
    scale = jnp.float32(float(hd) ** -0.5)
    # Fold the attention scale into the Q columns of w_qkv (zero in-kernel cost).
    col_scale = jnp.concatenate([jnp.full((C,), scale, jnp.float32),
                                 jnp.ones((2 * C,), jnp.float32)])[None, :]
    w_qkv = (p["w_qkv"] * col_scale).astype(_COMPUTE_DTYPE)
    return (p["ln0_w"], p["ln0_b"], w_qkv,
            p["w_proj"].astype(_COMPUTE_DTYPE), p["b_proj"],
            p["ln1_w"], p["ln1_b"],
            p["w1"].astype(_COMPUTE_DTYPE), p["b1"],
            (0.5 * p["w2"]).astype(_COMPUTE_DTYPE), p["b2"])   # GELU 0.5 folded here


def prep_stacked_params(layer_params, num_heads):
    """Stack per-layer prepped params along a leading L axis for the fused-stack kernel."""
    per_layer = [_prep_layer_params(p, num_heads) for p in layer_params]
    return tuple(jnp.stack(arrs, axis=0) for arrs in zip(*per_layer))


def transformer_stack(x, stacked, num_heads):
    B, N, C = x.shape
    assert C % num_heads == 0
    L = stacked[0].shape[0]
    Bt = _pick_batch_tile(B, N)
    M = Bt * N

    kernel = functools.partial(encoder_stack_kernel, num_heads=num_heads,
                               batch_tile=Bt, seq_len=N)

    in_specs = [pl.BlockSpec((Bt, N, C), lambda i, l: (i, 0, 0))]
    for a in stacked:
        nd = a.ndim
        in_specs.append(pl.BlockSpec((None,) + tuple(a.shape[1:]),
                                     lambda i, l, _nd=nd: (l,) + (0,) * (_nd - 1)))

    return pl.pallas_call(
        kernel,
        out_shape=jax.ShapeDtypeStruct((B, N, C), x.dtype),
        grid=(B // Bt, L),
        in_specs=in_specs,
        out_specs=pl.BlockSpec((Bt, N, C), lambda i, l: (i, 0, 0)),
        scratch_shapes=[pltpu.VMEM((M, C), jnp.float32),        # activation carry
                        pltpu.VMEM((M, C), _COMPUTE_DTYPE)],    # head-merge staging
        compiler_params=pltpu.CompilerParams(
            dimension_semantics=("parallel", "arbitrary"),
            vmem_limit_bytes=_vmem_limit_bytes()),
    )(x, *stacked)


# ----------------------------------------------------------------------------------
# TransformerLayer glue (positional embedding, param init, forward).
# ----------------------------------------------------------------------------------
def sinusoidal_embedding(n_channels, dim):
    i = jnp.arange(dim)
    p = jnp.arange(n_channels, dtype=jnp.float32)[:, None]
    denom = jnp.power(jnp.float32(10000.0), (2 * (i // 2)).astype(jnp.float32) / dim)
    pe = p / denom[None, :]
    pe = jnp.where((i % 2) == 0, jnp.sin(pe), jnp.cos(pe))
    return pe[None].astype(jnp.float32)                 # (1, N, C)


def init_params(key, embedding_dim, num_layers, mlp_ratio):
    C = embedding_dim
    FF = int(C * mlp_ratio)
    std = 0.02
    layers = []
    for _ in range(num_layers):
        key, k0, k1, k2, k3 = jax.random.split(key, 5)
        layers.append(dict(
            ln0_w=jnp.ones((1, C), jnp.float32),
            ln0_b=jnp.zeros((1, C), jnp.float32),
            w_qkv=(std * jax.random.truncated_normal(k0, -2.0, 2.0, (C, 3 * C))).astype(jnp.float32),
            w_proj=(std * jax.random.truncated_normal(k1, -2.0, 2.0, (C, C))).astype(jnp.float32),
            b_proj=jnp.zeros((1, C), jnp.float32),
            ln1_w=jnp.ones((1, C), jnp.float32),
            ln1_b=jnp.zeros((1, C), jnp.float32),
            w1=(std * jax.random.truncated_normal(k2, -2.0, 2.0, (C, FF))).astype(jnp.float32),
            b1=jnp.zeros((1, FF), jnp.float32),
            w2=(std * jax.random.truncated_normal(k3, -2.0, 2.0, (FF, C))).astype(jnp.float32),
            b2=jnp.zeros((1, C), jnp.float32),
        ))
    return layers


@functools.partial(jax.jit, static_argnames=("num_heads",))
def transformer_layer_forward(x, pos_emb, stacked_params, num_heads):
    x = x + pos_emb                # positional_embedding='sine'
    # nn.Dropout(p=dropout_rate) is an identity at inference time.
    return transformer_stack(x, stacked_params, num_heads)


# ----------------------------------------------------------------------------------
# Pure-JAX float32 reference (module semantics) for the correctness check.
# ----------------------------------------------------------------------------------
def _encoder_layer_ref(x, p, num_heads):
    B, N, C = x.shape
    hd = C // num_heads
    xn = _layer_norm(x, p["ln0_w"], p["ln0_b"])
    qkv = xn @ p["w_qkv"]
    q, k, v = qkv[..., :C], qkv[..., C:2 * C], qkv[..., 2 * C:]
    split = lambda t: t.reshape(B, N, num_heads, hd).transpose(0, 2, 1, 3)
    qh, kh, vh = split(q), split(k), split(v)
    s = jnp.einsum("bhqd,bhkd->bhqk", qh, kh) * (float(hd) ** -0.5)
    a = jax.nn.softmax(s, axis=-1)
    o = jnp.einsum("bhqk,bhkd->bhqd", a, vh).transpose(0, 2, 1, 3).reshape(B, N, C)
    o = o @ p["w_proj"] + p["b_proj"]
    src = x + o
    src = _layer_norm(src, p["ln1_w"], p["ln1_b"])
    h1 = jax.nn.gelu(src @ p["w1"] + p["b1"], approximate=False)
    h2 = h1 @ p["w2"] + p["b2"]
    return src + h2


def reference_forward(x, pos_emb, layer_params, num_heads):
    x = x + pos_emb
    for p in layer_params:
        x = _encoder_layer_ref(x, p, num_heads)
    return x


if __name__ == "__main__":
    # Small shapes consistent with the module: B=2, seq=8, embed=32, heads=4, layers=2.
    B, N, C, H, L = 2, 8, 32, 4, 2
    mlp_ratio = 4.0

    key = jax.random.PRNGKey(0)
    kx, kp = jax.random.split(key)
    x = jax.random.normal(kx, (B, N, C), dtype=jnp.float32)
    params = init_params(kp, C, L, mlp_ratio)
    pos_emb = sinusoidal_embedding(N, C)
    stacked = prep_stacked_params(params, H)

    out = transformer_layer_forward(x, pos_emb, stacked, num_heads=H)
    out = jax.block_until_ready(out)

    ref = reference_forward(x, pos_emb, params, H)
    assert out.shape == (B, N, C)
    max_err = float(jnp.max(jnp.abs(out - ref)))
    # bf16 matmul operands (f32 accumulation) vs full-f32 reference: ~1e-3 expected error.
    assert bool(jnp.allclose(out, ref, atol=1e-2, rtol=1e-2)), f"mismatch vs reference ({max_err})"

    print("KERNEL_OK")
</pallas_src>

<mosaic_0001>
module attributes {stable_mosaic.version = 11 : i64} {
  func.func @encoder_stack_kernel(%arg0: i32, %arg1: i32, %arg2: memref<1x8x32xf32, #tpu.memory_space<vmem>>, %arg3: memref<1x1x32xf32, #tpu.memory_space<vmem>>, %arg4: memref<1x1x32xf32, #tpu.memory_space<vmem>>, %arg5: memref<1x32x96xbf16, #tpu.memory_space<vmem>>, %arg6: memref<1x32x32xbf16, #tpu.memory_space<vmem>>, %arg7: memref<1x1x32xf32, #tpu.memory_space<vmem>>, %arg8: memref<1x1x32xf32, #tpu.memory_space<vmem>>, %arg9: memref<1x1x32xf32, #tpu.memory_space<vmem>>, %arg10: memref<1x32x128xbf16, #tpu.memory_space<vmem>>, %arg11: memref<1x1x128xf32, #tpu.memory_space<vmem>>, %arg12: memref<1x128x32xbf16, #tpu.memory_space<vmem>>, %arg13: memref<1x1x32xf32, #tpu.memory_space<vmem>>, %arg14: memref<1x8x32xf32, #tpu.memory_space<vmem>>, %arg15: memref<8x32xf32, #tpu.memory_space<vmem>>, %arg16: memref<8x32xbf16, #tpu.memory_space<vmem>>) attributes {dimension_semantics = [#tpu.dimension_semantics<parallel>, #tpu.dimension_semantics<arbitrary>], iteration_bounds = array<i64: 2, 2>, scalar_prefetch = 0 : i64, scratch_operands = 2 : i64, tpu.core_type = #tpu.core_type<tc>, window_params = [{transform_indices = @transform_0, window_bounds = array<i64: 1, 8, 32>}, {transform_indices = @transform_1, window_bounds = array<i64: 1, 1, 32>}, {transform_indices = @transform_2, window_bounds = array<i64: 1, 1, 32>}, {transform_indices = @transform_3, window_bounds = array<i64: 1, 32, 96>}, {transform_indices = @transform_4, window_bounds = array<i64: 1, 32, 32>}, {transform_indices = @transform_5, window_bounds = array<i64: 1, 1, 32>}, {transform_indices = @transform_6, window_bounds = array<i64: 1, 1, 32>}, {transform_indices = @transform_7, window_bounds = array<i64: 1, 1, 32>}, {transform_indices = @transform_8, window_bounds = array<i64: 1, 32, 128>}, {transform_indices = @transform_9, window_bounds = array<i64: 1, 1, 128>}, {transform_indices = @transform_10, window_bounds = array<i64: 1, 128, 32>}, {transform_indices = @transform_11, window_bounds = array<i64: 1, 1, 32>}, {transform_indices = @transform_12, window_bounds = array<i64: 1, 8, 32>}]} {
    %c0_i32 = arith.constant 0 : i32
    %0 = arith.cmpi eq, %arg1, %c0_i32 : i32
    %1 = arith.extui %0 : i1 to i32
    %c0_i32_0 = arith.constant 0 : i32
    %2 = arith.cmpi ne, %1, %c0_i32_0 : i32
    scf.if %2 {
      %c0_78 = arith.constant 0 : index
      %c0_79 = arith.constant 0 : index
      %c0_80 = arith.constant 0 : index
      %190 = vector.load %arg2[%c0_78, %c0_79, %c0_80] : memref<1x8x32xf32, #tpu.memory_space<vmem>>, vector<1x8x32xf32>
      %191 = vector.shape_cast %190 : vector<1x8x32xf32> to vector<8x32xf32>
      %c0_81 = arith.constant 0 : index
      %c0_82 = arith.constant 0 : index
      %192 = vector.load %arg15[%c0_81, %c0_82] : memref<8x32xf32, #tpu.memory_space<vmem>>, vector<8x32xf32>
      tpu.vector_store %arg15[%c0_81, %c0_82], %191 {strides = array<i32>} : memref<8x32xf32, #tpu.memory_space<vmem>>, vector<8x32xf32>,
    } else {
    }
    %c0 = arith.constant 0 : index
    %c0_1 = arith.constant 0 : index
    %3 = vector.load %arg15[%c0, %c0_1] : memref<8x32xf32, #tpu.memory_space<vmem>>, vector<8x32xf32>
    %c0_2 = arith.constant 0 : index
    %c0_3 = arith.constant 0 : index
    %c0_4 = arith.constant 0 : index
    %4 = vector.load %arg3[%c0_2, %c0_3, %c0_4] : memref<1x1x32xf32, #tpu.memory_space<vmem>>, vector<1x1x32xf32>
    %5 = vector.shape_cast %4 : vector<1x1x32xf32> to vector<1x32xf32>
    %c0_5 = arith.constant 0 : index
    %c0_6 = arith.constant 0 : index
    %c0_7 = arith.constant 0 : index
    %6 = vector.load %arg4[%c0_5, %c0_6, %c0_7] : memref<1x1x32xf32, #tpu.memory_space<vmem>>, vector<1x1x32xf32>
    %7 = vector.shape_cast %6 : vector<1x1x32xf32> to vector<1x32xf32>
    %cst = arith.constant dense<0.000000e+00> : vector<8xf32>
    %8 = vector.multi_reduction <add>, %3, %cst [1] : vector<8x32xf32> to vector<8xf32>
    %9 = vector.shape_cast %8 : vector<8xf32> to vector<8x1xf32>
    %cst_8 = arith.constant 3.200000e+01 : f32
    %10 = vector.broadcast %cst_8 : f32 to vector<8x1xf32>
    %11 = arith.divf %9, %10 : vector<8x1xf32>
    %12 = vector.broadcast %11 : vector<8x1xf32> to vector<8x32xf32>
    %13 = arith.subf %3, %12 : vector<8x32xf32>
    %14 = arith.mulf %13, %13 : vector<8x32xf32>
    %cst_9 = arith.constant dense<0.000000e+00> : vector<8xf32>
    %15 = vector.multi_reduction <add>, %14, %cst_9 [1] : vector<8x32xf32> to vector<8xf32>
    %16 = vector.shape_cast %15 : vector<8xf32> to vector<8x1xf32>
    %cst_10 = arith.constant 3.200000e+01 : f32
    %17 = vector.broadcast %cst_10 : f32 to vector<8x1xf32>
    %18 = arith.divf %16, %17 : vector<8x1xf32>
    %19 = vector.broadcast %11 : vector<8x1xf32> to vector<8x32xf32>
    %20 = arith.subf %3, %19 : vector<8x32xf32>
    %cst_11 = arith.constant 9.99999974E-6 : f32
    %21 = vector.broadcast %cst_11 : f32 to vector<8x1xf32>
    %22 = arith.addf %18, %21 : vector<8x1xf32>
    %23 = math.rsqrt %22 : vector<8x1xf32>
    %24 = vector.broadcast %23 : vector<8x1xf32> to vector<8x32xf32>
    %25 = arith.mulf %20, %24 : vector<8x32xf32>
    %26 = vector.broadcast %5 : vector<1x32xf32> to vector<8x32xf32>
    %27 = arith.mulf %25, %26 : vector<8x32xf32>
    %28 = vector.broadcast %7 : vector<1x32xf32> to vector<8x32xf32>
    %29 = arith.addf %27, %28 : vector<8x32xf32>
    %30 = arith.truncf %29 : vector<8x32xf32> to vector<8x32xbf16>
    %c0_12 = arith.constant 0 : index
    %c0_13 = arith.constant 0 : index
    %c0_14 = arith.constant 0 : index
    %31 = vector.load %arg5[%c0_12, %c0_13, %c0_14] : memref<1x32x96xbf16, #tpu.memory_space<vmem>>, vector<1x32x96xbf16>
    %32 = vector.shape_cast %31 : vector<1x32x96xbf16> to vector<32x96xbf16>
    %cst_15 = arith.constant dense<0.000000e+00> : vector<8x96xf32>
    %33 = tpu.matmul %30, %32, %cst_15 {dimension_numbers = #tpu.dot_dimension_numbers<[1], [0], [0], [1], [0, 0, 1, 1], [], []>} : vector<8x32xbf16>, vector<32x96xbf16>, vector<8x96xf32> -> vector<8x96xf32>
    %34 = arith.truncf %33 : vector<8x96xf32> to vector<8x96xbf16>
    %35 = vector.extract_strided_slice %34 {offsets = [0, 0], sizes = [8, 8], strides = [1, 1]} : vector<8x96xbf16> to vector<8x8xbf16>
    %36 = vector.extract_strided_slice %34 {offsets = [0, 8], sizes = [8, 8], strides = [1, 1]} : vector<8x96xbf16> to vector<8x8xbf16>
    %37 = vector.extract_strided_slice %34 {offsets = [0, 16], sizes = [8, 8], strides = [1, 1]} : vector<8x96xbf16> to vector<8x8xbf16>
    %38 = vector.extract_strided_slice %34 {offsets = [0, 24], sizes = [8, 8], strides = [1, 1]} : vector<8x96xbf16> to vector<8x8xbf16>
    %39 = vector.extract_strided_slice %34 {offsets = [0, 32], sizes = [8, 8], strides = [1, 1]} : vector<8x96xbf16> to vector<8x8xbf16>
    %40 = vector.extract_strided_slice %34 {offsets = [0, 40], sizes = [8, 8], strides = [1, 1]} : vector<8x96xbf16> to vector<8x8xbf16>
    %41 = vector.extract_strided_slice %34 {offsets = [0, 48], sizes = [8, 8], strides = [1, 1]} : vector<8x96xbf16> to vector<8x8xbf16>
    %42 = vector.extract_strided_slice %34 {offsets = [0, 56], sizes = [8, 8], strides = [1, 1]} : vector<8x96xbf16> to vector<8x8xbf16>
    %43 = vector.extract_strided_slice %34 {offsets = [0, 64], sizes = [8, 8], strides = [1, 1]} : vector<8x96xbf16> to vector<8x8xbf16>
    %44 = vector.extract_strided_slice %34 {offsets = [0, 72], sizes = [8, 8], strides = [1, 1]} : vector<8x96xbf16> to vector<8x8xbf16>
    %45 = vector.extract_strided_slice %34 {offsets = [0, 80], sizes = [8, 8], strides = [1, 1]} : vector<8x96xbf16> to vector<8x8xbf16>
    %46 = vector.extract_strided_slice %34 {offsets = [0, 88], sizes = [8, 8], strides = [1, 1]} : vector<8x96xbf16> to vector<8x8xbf16>
    %47 = vector.shape_cast %35 : vector<8x8xbf16> to vector<1x8x8xbf16>
    %48 = vector.shape_cast %36 : vector<8x8xbf16> to vector<1x8x8xbf16>
    %49 = vector.shape_cast %37 : vector<8x8xbf16> to vector<1x8x8xbf16>
    %50 = vector.shape_cast %38 : vector<8x8xbf16> to vector<1x8x8xbf16>
    %51 = vector.shape_cast %39 : vector<8x8xbf16> to vector<1x8x8xbf16>
    %52 = vector.shape_cast %40 : vector<8x8xbf16> to vector<1x8x8xbf16>
    %53 = vector.shape_cast %41 : vector<8x8xbf16> to vector<1x8x8xbf16>
    %54 = vector.shape_cast %42 : vector<8x8xbf16> to vector<1x8x8xbf16>
    %55 = vector.shape_cast %43 : vector<8x8xbf16> to vector<1x8x8xbf16>
    %56 = vector.shape_cast %44 : vector<8x8xbf16> to vector<1x8x8xbf16>
    %57 = vector.shape_cast %45 : vector<8x8xbf16> to vector<1x8x8xbf16>
    %58 = vector.shape_cast %46 : vector<8x8xbf16> to vector<1x8x8xbf16>
    %59 = tpu.concatenate %47, %48, %49, %50, %51, %52, %53, %54, %55, %56, %57, %58 in 0 : vector<1x8x8xbf16>, vector<1x8x8xbf16>, vector<1x8x8xbf16>, vector<1x8x8xbf16>, vector<1x8x8xbf16>, vector<1x8x8xbf16>, vector<1x8x8xbf16>, vector<1x8x8xbf16>, vector<1x8x8xbf16>, vector<1x8x8xbf16>, vector<1x8x8xbf16>, vector<1x8x8xbf16> -> vector<12x8x8xbf16>
    %60 = vector.extract_strided_slice %59 {offsets = [0, 0, 0], sizes = [4, 8, 8], strides = [1, 1, 1]} : vector<12x8x8xbf16> to vector<4x8x8xbf16>
    %61 = vector.extract_strided_slice %59 {offsets = [4, 0, 0], sizes = [4, 8, 8], strides = [1, 1, 1]} : vector<12x8x8xbf16> to vector<4x8x8xbf16>
    %62 = vector.extract_strided_slice %59 {offsets = [8, 0, 0], sizes = [4, 8, 8], strides = [1, 1, 1]} : vector<12x8x8xbf16> to vector<4x8x8xbf16>
    %cst_16 = arith.constant dense<0.000000e+00> : vector<4x8x8xf32>
    %63 = tpu.matmul %60, %61, %cst_16 {dimension_numbers = #tpu.dot_dimension_numbers<[2], [2], [1], [1], [0, 0, 0, 1, 1, 1], [0], [0]>} : vector<4x8x8xbf16>, vector<4x8x8xbf16>, vector<4x8x8xf32> -> vector<4x8x8xf32>
    %cst_17 = arith.constant dense<0xFF800000> : vector<4x8xf32>
    %64 = vector.multi_reduction <maximumf>, %63, %cst_17 [2] : vector<4x8x8xf32> to vector<4x8xf32>
    %65 = vector.shape_cast %64 : vector<4x8xf32> to vector<4x8x1xf32>
    %66 = vector.broadcast %65 : vector<4x8x1xf32> to vector<4x8x8xf32>
    %67 = arith.subf %63, %66 : vector<4x8x8xf32>
    %68 = math.exp %67 : vector<4x8x8xf32>
    %cst_18 = arith.constant dense<0.000000e+00> : vector<4x8xf32>
    %69 = vector.multi_reduction <add>, %68, %cst_18 [2] : vector<4x8x8xf32> to vector<4x8xf32>
    %70 = vector.shape_cast %69 : vector<4x8xf32> to vector<4x8x1xf32>
    %71 = tpu.reciprocal %70 {approx = true} : vector<4x8x1xf32> -> vector<4x8x1xf32>
    %72 = vector.broadcast %71 : vector<4x8x1xf32> to vector<4x8x8xf32>
    %73 = arith.mulf %68, %72 : vector<4x8x8xf32>
    %74 = arith.truncf %73 : vector<4x8x8xf32> to vector<4x8x8xbf16>
    %cst_19 = arith.constant dense<0.000000e+00> : vector<4x8x8xf32>
    %75 = tpu.matmul %74, %62, %cst_19 {dimension_numbers = #tpu.dot_dimension_numbers<[2], [1], [1], [2], [0, 0, 0, 1, 1, 2], [0], [0]>} : vector<4x8x8xbf16>, vector<4x8x8xbf16>, vector<4x8x8xf32> -> vector<4x8x8xf32>
    %76 = arith.truncf %75 : vector<4x8x8xf32> to vector<4x8x8xbf16>
    %77 = vector.extract_strided_slice %76 {offsets = [0, 0, 0], sizes = [1, 8, 8], strides = [1, 1, 1]} : vector<4x8x8xbf16> to vector<1x8x8xbf16>
    %78 = vector.shape_cast %77 : vector<1x8x8xbf16> to vector<8x8xbf16>
    %c0_20 = arith.constant 0 : index
    %c0_21 = arith.constant 0 : index
    %79 = vector.load %arg16[%c0_20, %c0_21] : memref<8x32xbf16, #tpu.memory_space<vmem>>, vector<8x8xbf16>
    tpu.vector_store %arg16[%c0_20, %c0_21], %78 {strides = array<i32>} : memref<8x32xbf16, #tpu.memory_space<vmem>>, vector<8x8xbf16>,
    %80 = vector.extract_strided_slice %76 {offsets = [1, 0, 0], sizes = [1, 8, 8], strides = [1, 1, 1]} : vector<4x8x8xbf16> to vector<1x8x8xbf16>
    %81 = vector.shape_cast %80 : vector<1x8x8xbf16> to vector<8x8xbf16>
    %c0_22 = arith.constant 0 : index
    %c8 = arith.constant 8 : index
    %82 = vector.load %arg16[%c0_22, %c8] : memref<8x32xbf16, #tpu.memory_space<vmem>>, vector<8x8xbf16>
    tpu.vector_store %arg16[%c0_22, %c8], %81 {strides = array<i32>} : memref<8x32xbf16, #tpu.memory_space<vmem>>, vector<8x8xbf16>,
    %83 = vector.extract_strided_slice %76 {offsets = [2, 0, 0], sizes = [1, 8, 8], strides = [1, 1, 1]} : vector<4x8x8xbf16> to vector<1x8x8xbf16>
    %84 = vector.shape_cast %83 : vector<1x8x8xbf16> to vector<8x8xbf16>
    %c0_23 = arith.constant 0 : index
    %c16 = arith.constant 16 : index
    %85 = vector.load %arg16[%c0_23, %c16] : memref<8x32xbf16, #tpu.memory_space<vmem>>, vector<8x8xbf16>
    tpu.vector_store %arg16[%c0_23, %c16], %84 {strides = array<i32>} : memref<8x32xbf16, #tpu.memory_space<vmem>>, vector<8x8xbf16>,
    %86 = vector.extract_strided_slice %76 {offsets = [3, 0, 0], sizes = [1, 8, 8], strides = [1, 1, 1]} : vector<4x8x8xbf16> to vector<1x8x8xbf16>
    %87 = vector.shape_cast %86 : vector<1x8x8xbf16> to vector<8x8xbf16>
    %c0_24 = arith.constant 0 : index
    %c24 = arith.constant 24 : index
    %88 = vector.load %arg16[%c0_24, %c24] : memref<8x32xbf16, #tpu.memory_space<vmem>>, vector<8x8xbf16>
    tpu.vector_store %arg16[%c0_24, %c24], %87 {strides = array<i32>} : memref<8x32xbf16, #tpu.memory_space<vmem>>, vector<8x8xbf16>,
    %c0_25 = arith.constant 0 : index
    %c0_26 = arith.constant 0 : index
    %89 = vector.load %arg16[%c0_25, %c0_26] : memref<8x32xbf16, #tpu.memory_space<vmem>>, vector<8x32xbf16>
    %c0_27 = arith.constant 0 : index
    %c0_28 = arith.constant 0 : index
    %c0_29 = arith.constant 0 : index
    %90 = vector.load %arg6[%c0_27, %c0_28, %c0_29] : memref<1x32x32xbf16, #tpu.memory_space<vmem>>, vector<1x32x32xbf16>
    %91 = vector.shape_cast %90 : vector<1x32x32xbf16> to vector<32x32xbf16>
    %cst_30 = arith.constant dense<0.000000e+00> : vector<8x32xf32>
    %92 = tpu.matmul %89, %91, %cst_30 {dimension_numbers = #tpu.dot_dimension_numbers<[1], [0], [0], [1], [0, 0, 1, 1], [], []>} : vector<8x32xbf16>, vector<32x32xbf16>, vector<8x32xf32> -> vector<8x32xf32>
    %c0_31 = arith.constant 0 : index
    %c0_32 = arith.constant 0 : index
    %c0_33 = arith.constant 0 : index
    %93 = vector.load %arg7[%c0_31, %c0_32, %c0_33] : memref<1x1x32xf32, #tpu.memory_space<vmem>>, vector<1x1x32xf32>
    %94 = vector.shape_cast %93 : vector<1x1x32xf32> to vector<1x32xf32>
    %95 = vector.broadcast %94 : vector<1x32xf32> to vector<8x32xf32>
    %96 = arith.addf %92, %95 : vector<8x32xf32>
    %97 = arith.addf %3, %96 : vector<8x32xf32>
    %c0_34 = arith.constant 0 : index
    %c0_35 = arith.constant 0 : index
    %c0_36 = arith.constant 0 : index
    %98 = vector.load %arg8[%c0_34, %c0_35, %c0_36] : memref<1x1x32xf32, #tpu.memory_space<vmem>>, vector<1x1x32xf32>
    %99 = vector.shape_cast %98 : vector<1x1x32xf32> to vector<1x32xf32>
    %c0_37 = arith.constant 0 : index
    %c0_38 = arith.constant 0 : index
    %c0_39 = arith.constant 0 : index
    %100 = vector.load %arg9[%c0_37, %c0_38, %c0_39] : memref<1x1x32xf32, #tpu.memory_space<vmem>>, vector<1x1x32xf32>
    %101 = vector.shape_cast %100 : vector<1x1x32xf32> to vector<1x32xf32>
    %cst_40 = arith.constant dense<0.000000e+00> : vector<8xf32>
    %102 = vector.multi_reduction <add>, %97, %cst_40 [1] : vector<8x32xf32> to vector<8xf32>
    %103 = vector.shape_cast %102 : vector<8xf32> to vector<8x1xf32>
    %cst_41 = arith.constant 3.200000e+01 : f32
    %104 = vector.broadcast %cst_41 : f32 to vector<8x1xf32>
    %105 = arith.divf %103, %104 : vector<8x1xf32>
    %106 = vector.broadcast %105 : vector<8x1xf32> to vector<8x32xf32>
    %107 = arith.subf %97, %106 : vector<8x32xf32>
    %108 = arith.mulf %107, %107 : vector<8x32xf32>
    %cst_42 = arith.constant dense<0.000000e+00> : vector<8xf32>
    %109 = vector.multi_reduction <add>, %108, %cst_42 [1] : vector<8x32xf32> to vector<8xf32>
    %110 = vector.shape_cast %109 : vector<8xf32> to vector<8x1xf32>
    %cst_43 = arith.constant 3.200000e+01 : f32
    %111 = vector.broadcast %cst_43 : f32 to vector<8x1xf32>
    %112 = arith.divf %110, %111 : vector<8x1xf32>
    %113 = vector.broadcast %105 : vector<8x1xf32> to vector<8x32xf32>
    %114 = arith.subf %97, %113 : vector<8x32xf32>
    %cst_44 = arith.constant 9.99999974E-6 : f32
    %115 = vector.broadcast %cst_44 : f32 to vector<8x1xf32>
    %116 = arith.addf %112, %115 : vector<8x1xf32>
    %117 = math.rsqrt %116 : vector<8x1xf32>
    %118 = vector.broadcast %117 : vector<8x1xf32> to vector<8x32xf32>
    %119 = arith.mulf %114, %118 : vector<8x32xf32>
    %120 = vector.broadcast %99 : vector<1x32xf32> to vector<8x32xf32>
    %121 = arith.mulf %119, %120 : vector<8x32xf32>
    %122 = vector.broadcast %101 : vector<1x32xf32> to vector<8x32xf32>
    %123 = arith.addf %121, %122 : vector<8x32xf32>
    %124 = arith.truncf %123 : vector<8x32xf32> to vector<8x32xbf16>
    %c0_45 = arith.constant 0 : index
    %c0_46 = arith.constant 0 : index
    %c0_47 = arith.constant 0 : index
    %125 = vector.load %arg10[%c0_45, %c0_46, %c0_47] : memref<1x32x128xbf16, #tpu.memory_space<vmem>>, vector<1x32x128xbf16>
    %126 = vector.shape_cast %125 : vector<1x32x128xbf16> to vector<32x128xbf16>
    %cst_48 = arith.constant dense<0.000000e+00> : vector<8x128xf32>
    %127 = tpu.matmul %124, %126, %cst_48 {dimension_numbers = #tpu.dot_dimension_numbers<[1], [0], [0], [1], [0, 0, 1, 1], [], []>} : vector<8x32xbf16>, vector<32x128xbf16>, vector<8x128xf32> -> vector<8x128xf32>
    %c0_49 = arith.constant 0 : index
    %c0_50 = arith.constant 0 : index
    %c0_51 = arith.constant 0 : index
    %128 = vector.load %arg11[%c0_49, %c0_50, %c0_51] : memref<1x1x128xf32, #tpu.memory_space<vmem>>, vector<1x1x128xf32>
    %129 = vector.shape_cast %128 : vector<1x1x128xf32> to vector<1x128xf32>
    %130 = vector.broadcast %129 : vector<1x128xf32> to vector<8x128xf32>
    %131 = arith.addf %127, %130 : vector<8x128xf32>
    %cst_52 = arith.constant 0.707106769 : f32
    %132 = vector.broadcast %cst_52 : f32 to vector<8x128xf32>
    %133 = arith.mulf %131, %132 : vector<8x128xf32>
    %cst_53 = arith.constant -4.000000e+00 : f32
    %cst_54 = arith.constant 4.000000e+00 : f32
    %134 = vector.broadcast %cst_53 : f32 to vector<8x128xf32>
    %135 = arith.maximumf %134, %133 : vector<8x128xf32>
    %136 = vector.broadcast %cst_54 : f32 to vector<8x128xf32>
    %137 = arith.minimumf %136, %135 : vector<8x128xf32>
    %138 = arith.mulf %137, %137 : vector<8x128xf32>
    %cst_55 = arith.constant -2.72614237E-10 : f32
    %139 = vector.broadcast %cst_55 : f32 to vector<8x128xf32>
    %140 = arith.mulf %139, %138 : vector<8x128xf32>
    %cst_56 = arith.constant 2.77068146E-8 : f32
    %141 = vector.broadcast %cst_56 : f32 to vector<8x128xf32>
    %142 = arith.addf %140, %141 : vector<8x128xf32>
    %143 = arith.mulf %142, %138 : vector<8x128xf32>
    %cst_57 = arith.constant -2.10102394E-6 : f32
    %144 = vector.broadcast %cst_57 : f32 to vector<8x128xf32>
    %145 = arith.addf %143, %144 : vector<8x128xf32>
    %146 = arith.mulf %145, %138 : vector<8x128xf32>
    %cst_58 = arith.constant -5.69250624E-5 : f32
    %147 = vector.broadcast %cst_58 : f32 to vector<8x128xf32>
    %148 = arith.addf %146, %147 : vector<8x128xf32>
    %149 = arith.mulf %148, %138 : vector<8x128xf32>
    %cst_59 = arith.constant -7.34990637E-4 : f32
    %150 = vector.broadcast %cst_59 : f32 to vector<8x128xf32>
    %151 = arith.addf %149, %150 : vector<8x128xf32>
    %152 = arith.mulf %151, %138 : vector<8x128xf32>
    %cst_60 = arith.constant -2.954600e-03 : f32
    %153 = vector.broadcast %cst_60 : f32 to vector<8x128xf32>
    %154 = arith.addf %152, %153 : vector<8x128xf32>
    %155 = arith.mulf %154, %138 : vector<8x128xf32>
    %cst_61 = arith.constant -0.0160960332 : f32
    %156 = vector.broadcast %cst_61 : f32 to vector<8x128xf32>
    %157 = arith.addf %155, %156 : vector<8x128xf32>
    %158 = arith.mulf %157, %137 : vector<8x128xf32>
    %cst_62 = arith.constant -1.45660715E-5 : f32
    %159 = vector.broadcast %cst_62 : f32 to vector<8x128xf32>
    %160 = arith.mulf %159, %138 : vector<8x128xf32>
    %cst_63 = arith.constant -2.13374049E-4 : f32
    %161 = vector.broadcast %cst_63 : f32 to vector<8x128xf32>
    %162 = arith.addf %160, %161 : vector<8x128xf32>
    %163 = arith.mulf %162, %138 : vector<8x128xf32>
    %cst_64 = arith.constant -0.00168282702 : f32
    %164 = vector.broadcast %cst_64 : f32 to vector<8x128xf32>
    %165 = arith.addf %163, %164 : vector<8x128xf32>
    %166 = arith.mulf %165, %138 : vector<8x128xf32>
    %cst_65 = arith.constant -0.00737332925 : f32
    %167 = vector.broadcast %cst_65 : f32 to vector<8x128xf32>
    %168 = arith.addf %166, %167 : vector<8x128xf32>
    %169 = arith.mulf %168, %138 : vector<8x128xf32>
    %cst_66 = arith.constant -0.0142647391 : f32
    %170 = vector.broadcast %cst_66 : f32 to vector<8x128xf32>
    %171 = arith.addf %169, %170 : vector<8x128xf32>
    %172 = tpu.reciprocal %171 {approx = true} : vector<8x128xf32> -> vector<8x128xf32>
    %173 = arith.mulf %158, %172 : vector<8x128xf32>
    %cst_67 = arith.constant 1.000000e+00 : f32
    %174 = vector.broadcast %cst_67 : f32 to vector<8x128xf32>
    %175 = arith.addf %174, %173 : vector<8x128xf32>
    %176 = arith.mulf %131, %175 : vector<8x128xf32>
    %177 = arith.truncf %176 : vector<8x128xf32> to vector<8x128xbf16>
    %c0_68 = arith.constant 0 : index
    %c0_69 = arith.constant 0 : index
    %c0_70 = arith.constant 0 : index
    %178 = vector.load %arg12[%c0_68, %c0_69, %c0_70] : memref<1x128x32xbf16, #tpu.memory_space<vmem>>, vector<1x128x32xbf16>
    %179 = vector.shape_cast %178 : vector<1x128x32xbf16> to vector<128x32xbf16>
    %cst_71 = arith.constant dense<0.000000e+00> : vector<8x32xf32>
    %180 = tpu.matmul %177, %179, %cst_71 {dimension_numbers = #tpu.dot_dimension_numbers<[1], [0], [0], [1], [0, 0, 1, 1], [], []>} : vector<8x128xbf16>, vector<128x32xbf16>, vector<8x32xf32> -> vector<8x32xf32>
    %c0_72 = arith.constant 0 : index
    %c0_73 = arith.constant 0 : index
    %c0_74 = arith.constant 0 : index
    %181 = vector.load %arg13[%c0_72, %c0_73, %c0_74] : memref<1x1x32xf32, #tpu.memory_space<vmem>>, vector<1x1x32xf32>
    %182 = vector.shape_cast %181 : vector<1x1x32xf32> to vector<1x32xf32>
    %183 = vector.broadcast %182 : vector<1x32xf32> to vector<8x32xf32>
    %184 = arith.addf %180, %183 : vector<8x32xf32>
    %185 = arith.addf %123, %184 : vector<8x32xf32>
    %c0_75 = arith.constant 0 : index
    %c0_76 = arith.constant 0 : index
    %186 = vector.load %arg15[%c0_75, %c0_76] : memref<8x32xf32, #tpu.memory_space<vmem>>, vector<8x32xf32>
    tpu.vector_store %arg15[%c0_75, %c0_76], %185 {strides = array<i32>} : memref<8x32xf32, #tpu.memory_space<vmem>>, vector<8x32xf32>,
    %c1_i32 = arith.constant 1 : i32
    %187 = arith.cmpi eq, %arg1, %c1_i32 : i32
    %188 = arith.extui %187 : i1 to i32
    %c0_i32_77 = arith.constant 0 : i32
    %189 = arith.cmpi ne, %188, %c0_i32_77 : i32
    scf.if %189 {
      %190 = vector.shape_cast %185 : vector<8x32xf32> to vector<1x8x32xf32>
      %c0_78 = arith.constant 0 : index
      %c0_79 = arith.constant 0 : index
      %c0_80 = arith.constant 0 : index
      %191 = vector.load %arg14[%c0_78, %c0_79, %c0_80] : memref<1x8x32xf32, #tpu.memory_space<vmem>>, vector<1x8x32xf32>
      tpu.vector_store %arg14[%c0_78, %c0_79, %c0_80], %190 {strides = array<i32>} : memref<1x8x32xf32, #tpu.memory_space<vmem>>, vector<1x8x32xf32>,
    } else {
    }
    return
  }
  func.func @transform_0(%arg0: i32, %arg1: i32) -> (i32, i32, i32) {
    %c0_i32 = arith.constant 0 : i32
    %c0_i32_0 = arith.constant 0 : i32
    %c0_i32_1 = arith.constant 0 : i32
    return %arg0, %c0_i32, %c0_i32_0 : i32, i32, i32
  }
  func.func @transform_1(%arg0: i32, %arg1: i32) -> (i32, i32, i32) {
    %c0_i32 = arith.constant 0 : i32
    %c0_i32_0 = arith.constant 0 : i32
    %c0_i32_1 = arith.constant 0 : i32
    return %arg1, %c0_i32, %c0_i32_0 : i32, i32, i32
  }
  func.func @transform_2(%arg0: i32, %arg1: i32) -> (i32, i32, i32) {
    %c0_i32 = arith.constant 0 : i32
    %c0_i32_0 = arith.constant 0 : i32
    %c0_i32_1 = arith.constant 0 : i32
    return %arg1, %c0_i32, %c0_i32_0 : i32, i32, i32
  }
  func.func @transform_3(%arg0: i32, %arg1: i32) -> (i32, i32, i32) {
    %c0_i32 = arith.constant 0 : i32
    %c0_i32_0 = arith.constant 0 : i32
    %c0_i32_1 = arith.constant 0 : i32
    return %arg1, %c0_i32, %c0_i32_0 : i32, i32, i32
  }
  func.func @transform_4(%arg0: i32, %arg1: i32) -> (i32, i32, i32) {
    %c0_i32 = arith.constant 0 : i32
    %c0_i32_0 = arith.constant 0 : i32
    %c0_i32_1 = arith.constant 0 : i32
    return %arg1, %c0_i32, %c0_i32_0 : i32, i32, i32
  }
  func.func @transform_5(%arg0: i32, %arg1: i32) -> (i32, i32, i32) {
    %c0_i32 = arith.constant 0 : i32
    %c0_i32_0 = arith.constant 0 : i32
    %c0_i32_1 = arith.constant 0 : i32
    return %arg1, %c0_i32, %c0_i32_0 : i32, i32, i32
  }
  func.func @transform_6(%arg0: i32, %arg1: i32) -> (i32, i32, i32) {
    %c0_i32 = arith.constant 0 : i32
    %c0_i32_0 = arith.constant 0 : i32
    %c0_i32_1 = arith.constant 0 : i32
    return %arg1, %c0_i32, %c0_i32_0 : i32, i32, i32
  }
  func.func @transform_7(%arg0: i32, %arg1: i32) -> (i32, i32, i32) {
    %c0_i32 = arith.constant 0 : i32
    %c0_i32_0 = arith.constant 0 : i32
    %c0_i32_1 = arith.constant 0 : i32
    return %arg1, %c0_i32, %c0_i32_0 : i32, i32, i32
  }
  func.func @transform_8(%arg0: i32, %arg1: i32) -> (i32, i32, i32) {
    %c0_i32 = arith.constant 0 : i32
    %c0_i32_0 = arith.constant 0 : i32
    %c0_i32_1 = arith.constant 0 : i32
    return %arg1, %c0_i32, %c0_i32_0 : i32, i32, i32
  }
  func.func @transform_9(%arg0: i32, %arg1: i32) -> (i32, i32, i32) {
    %c0_i32 = arith.constant 0 : i32
    %c0_i32_0 = arith.constant 0 : i32
    %c0_i32_1 = arith.constant 0 : i32
    return %arg1, %c0_i32, %c0_i32_0 : i32, i32, i32
  }
  func.func @transform_10(%arg0: i32, %arg1: i32) -> (i32, i32, i32) {
    %c0_i32 = arith.constant 0 : i32
    %c0_i32_0 = arith.constant 0 : i32
    %c0_i32_1 = arith.constant 0 : i32
    return %arg1, %c0_i32, %c0_i32_0 : i32, i32, i32
  }
  func.func @transform_11(%arg0: i32, %arg1: i32) -> (i32, i32, i32) {
    %c0_i32 = arith.constant 0 : i32
    %c0_i32_0 = arith.constant 0 : i32
    %c0_i32_1 = arith.constant 0 : i32
    return %arg1, %c0_i32, %c0_i32_0 : i32, i32, i32
  }
  func.func @transform_12(%arg0: i32, %arg1: i32) -> (i32, i32, i32) {
    %c0_i32 = arith.constant 0 : i32
    %c0_i32_0 = arith.constant 0 : i32
    %c0_i32_1 = arith.constant 0 : i32
    return %arg0, %c0_i32, %c0_i32_0 : i32, i32, i32
  }
}

</mosaic_0001>

<llo_original>
// kernel: transformer_layer_forward.1
$region0: #{transformer_layer_forward.1}
  #allocation0 [shape = 'u32[]', space=smem, size = 0x4, offset = 0x4, fixed_abs, tag = 'smem constant byte address 0x4 - core index']
  #allocation1 [shape = 'u32[72,128]{1,0:T(1,128)}', space=vmem, size = 0x9000, scoped, tag = 'internal scratch']
  #allocation2 [shape = 'f32[8,32]{1,0:T(8,128)}', space=vmem, size = 0x1000, scoped, tag = 'scratch operand']
  #allocation3 [shape = 'bf16[8,32]{1,0:T(8,128)(2,1)}', space=vmem, size = 0x800, scoped, tag = 'scratch operand']
  %s0 = inlined_call_operand.vmem [shape: f32[2,8,32], index: 0, kind: input, shape index: {}]
  %s1 = inlined_call_operand.vmem [shape: f32[2,1,32], index: 1, kind: input, shape index: {}]
  %s2 = inlined_call_operand.vmem [shape: f32[2,1,32], index: 2, kind: input, shape index: {}]
  %s3 = inlined_call_operand.vmem [shape: bf16[2,32,96], index: 3, kind: input, shape index: {}]
  %s4 = inlined_call_operand.vmem [shape: bf16[2,32,32], index: 4, kind: input, shape index: {}]
  %s5 = inlined_call_operand.vmem [shape: f32[2,1,32], index: 5, kind: input, shape index: {}]
  %s6 = inlined_call_operand.vmem [shape: f32[2,1,32], index: 6, kind: input, shape index: {}]
  %s7 = inlined_call_operand.vmem [shape: f32[2,1,32], index: 7, kind: input, shape index: {}]
  %s8 = inlined_call_operand.vmem [shape: bf16[2,32,128], index: 8, kind: input, shape index: {}]
  %s9 = inlined_call_operand.vmem [shape: f32[2,1,128], index: 9, kind: input, shape index: {}]
  %s10 = inlined_call_operand.vmem [shape: bf16[2,128,32], index: 10, kind: input, shape index: {}]
  %s11 = inlined_call_operand.vmem [shape: f32[2,1,32], index: 11, kind: input, shape index: {}]
  %s12 = inlined_call_operand.hbm [shape: f32[2,8,32], index: 12, kind: output, shape index: {}]
  %s13 = sld [smem:[#allocation0]]
  $region89: #{transformer_layer_forward.1} parent=0
    _
  %s15 = ssub.s32 1, %s13
  %s16 = scalar_select 0, %s15, %s13
  $region1: #{transformer_layer_forward.1} parent=0
    #allocation4 [shape = 'u8[8192]{0}', space=vmem, size = 0x2000, scoped, tag = 'output window, operand 0']
    #allocation5 [shape = 's32[2]{0}', space=sflag, size = 0x8, scoped, tag = 'scoped memory for transformer_layer_forward.1']
    %17 = vsyncpa [#allocation5], 0
    %s18 = scalar_lea.sflag [#allocation5], 1
    %19 = vsyncpa %s18, 0
    loop: start=0, step=1, limit=6
    $region2: #{transformer_layer_forward.1} parent=1 // loop_pre_header
      _
    $region3: #{transformer_layer_forward.1} parent=1 // loop_header
      %s21 = sphi 0, %s25
      %p22 = scmp.ge.s32.totalorder %s21, 6
      %s28 = sphi 0, %s40
      %s29 = sphi 0, %s36
      %s30 = sphi 0, %s28
      %s31 = sphi 0, %s29
      %s32 = sphi 0, %s30
      %s33 = sphi 0, %s31
      %s43 = sphi 0, %s45
      %s46 = sphi 0, %s43
      %s47 = sphi 0, %s46
      %s63 = sphi 0, %s47
      %s69 = sphi 0, %s71
      %s72 = sphi 0, %s69
      %s73 = sphi 0, %s72
      %s89 = sphi 0, %s73
      %s95 = sphi 0, %s97
      %s98 = sphi 0, %s95
      %s99 = sphi 0, %s98
      %s115 = sphi 0, %s99
      %s121 = sphi 0, %s123
      %s124 = sphi 0, %s121
      %s125 = sphi 0, %s124
      %s141 = sphi 0, %s125
      %s147 = sphi 0, %s149
      %s150 = sphi 0, %s147
      %s151 = sphi 0, %s150
      %s167 = sphi 0, %s151
      %s173 = sphi 0, %s175
      %s176 = sphi 0, %s173
      %s177 = sphi 0, %s176
      %s193 = sphi 0, %s177
      %s199 = sphi 0, %s201
      %s202 = sphi 0, %s199
      %s203 = sphi 0, %s202
      %s219 = sphi 0, %s203
      %s225 = sphi 0, %s227
      %s228 = sphi 0, %s225
      %s229 = sphi 0, %s228
      %s245 = sphi 0, %s229
      %s251 = sphi 0, %s253
      %s254 = sphi 0, %s251
      %s255 = sphi 0, %s254
      %s271 = sphi 0, %s255
      %s277 = sphi 0, %s279
      %s280 = sphi 0, %s277
      %s281 = sphi 0, %s280
      %s297 = sphi 0, %s281
      %s303 = sphi 0, %s305
      %s306 = sphi 0, %s303
      %s307 = sphi 0, %s306
      %s323 = sphi 0, %s307
      %s329 = sphi 0, %s331
      %s332 = sphi 0, %s329
      %s333 = sphi 0, %s332
      %s349 = sphi 0, %s333
      %s355 = sphi 0, %s357
      %s358 = sphi 0, %s355
      %s359 = sphi 0, %s358
      %s375 = sphi 0, %s359
    $region4: #{transformer_layer_forward.1} parent=1 // loop_header_branch
      %24 = sbr.rel (%p22) target = $region8
    $region5: #{transformer_layer_forward.1} parent=1 // loop_body
      %s26 = ssub.s32 %s21, 1
      %s27 = ssub.s32 %s21, 2
      %s34 = sadd.s32 1, %s29
      %p35 = scmp.ge.s32.totalorder %s34, 2
      %s36 = scalar_select %p35, 0, %s34
      %s37 = sadd.s32 1, %s28
      %s38 = scalar_select %p35, %s37, %s28
      %p39 = scmp.ge.s32.totalorder %s38, 2
      %s40 = scalar_select %p39, 0, %s38
      %s41 = ssub.s32 %s28, %s40
      %p42 = scmp.eq.s32.totalorder %s41, 0
      %s44 = sadd.s32 %s43, 1
      %s45 = scalar_select %p42, %s43, %s44
      %p48 = pneg %p42
      %p49 = scmp.eq.s32.totalorder %s21, 3
      %p50 = por %p48, %p49
      %p51 = scmp.ne.s32.totalorder %s43, %s46
      %p52 = scmp.eq.s32.totalorder %s21, 0
      %p53 = por %p51, %p52
      %p54 = scmp.ne.s32.totalorder %s43, %s46
      %p55 = scmp.eq.s32.totalorder %s26, 3
      %p56 = por %p54, %p55
      %p57 = scmp.ne.s32.totalorder %s46, %s47
      %p58 = scmp.eq.s32.totalorder %s26, 0
      %p59 = por %p57, %p58
      %p60 = scmp.ne.s32.totalorder %s46, %s47
      %p61 = scmp.eq.s32.totalorder %s27, 3
      %p62 = por %p60, %p61
      %p64 = scmp.ne.s32.totalorder %s47, %s63
      %p65 = scmp.eq.s32.totalorder %s27, 0
      %p66 = por %p64, %p65
      %s67 = ssub.s32 %s29, %s36
      %p68 = scmp.eq.s32.totalorder %s67, 0
      %s70 = sadd.s32 %s69, 1
      %s71 = scalar_select %p68, %s69, %s70
      %p74 = pneg %p68
      %p75 = scmp.eq.s32.totalorder %s21, 3
      %p76 = por %p74, %p75
      %p77 = scmp.ne.s32.totalorder %s69, %s72
      %p78 = scmp.eq.s32.totalorder %s21, 0
      %p79 = por %p77, %p78
      %p80 = scmp.ne.s32.totalorder %s69, %s72
      %p81 = scmp.eq.s32.totalorder %s26, 3
      %p82 = por %p80, %p81
      %p83 = scmp.ne.s32.totalorder %s72, %s73
      %p84 = scmp.eq.s32.totalorder %s26, 0
      %p85 = por %p83, %p84
      %p86 = scmp.ne.s32.totalorder %s72, %s73
      %p87 = scmp.eq.s32.totalorder %s27, 3
      %p88 = por %p86, %p87
      %p90 = scmp.ne.s32.totalorder %s73, %s89
      %p91 = scmp.eq.s32.totalorder %s27, 0
      %p92 = por %p90, %p91
      %s93 = ssub.s32 %s29, %s36
      %p94 = scmp.eq.s32.totalorder %s93, 0
      %s96 = sadd.s32 %s95, 1
      %s97 = scalar_select %p94, %s95, %s96
      %p100 = pneg %p94
      %p101 = scmp.eq.s32.totalorder %s21, 3
      %p102 = por %p100, %p101
      %p103 = scmp.ne.s32.totalorder %s95, %s98
      %p104 = scmp.eq.s32.totalorder %s21, 0
      %p105 = por %p103, %p104
      %p106 = scmp.ne.s32.totalorder %s95, %s98
      %p107 = scmp.eq.s32.totalorder %s26, 3
      %p108 = por %p106, %p107
      %p109 = scmp.ne.s32.totalorder %s98, %s99
      %p110 = scmp.eq.s32.totalorder %s26, 0
      %p111 = por %p109, %p110
      %p112 = scmp.ne.s32.totalorder %s98, %s99
      %p113 = scmp.eq.s32.totalorder %s27, 3
      %p114 = por %p112, %p113
      %p116 = scmp.ne.s32.totalorder %s99, %s115
      %p117 = scmp.eq.s32.totalorder %s27, 0
      %p118 = por %p116, %p117
      %s119 = ssub.s32 %s29, %s36
      %p120 = scmp.eq.s32.totalorder %s119, 0
      %s122 = sadd.s32 %s121, 1
      %s123 = scalar_select %p120, %s121, %s122
      %p126 = pneg %p120
      %p127 = scmp.eq.s32.totalorder %s21, 3
      %p128 = por %p126, %p127
      %p129 = scmp.ne.s32.totalorder %s121, %s124
      %p130 = scmp.eq.s32.totalorder %s21, 0
      %p131 = por %p129, %p130
      %p132 = scmp.ne.s32.totalorder %s121, %s124
      %p133 = scmp.eq.s32.totalorder %s26, 3
      %p134 = por %p132, %p133
      %p135 = scmp.ne.s32.totalorder %s124, %s125
      %p136 = scmp.eq.s32.totalorder %s26, 0
      %p137 = por %p135, %p136
      %p138 = scmp.ne.s32.totalorder %s124, %s125
      %p139 = scmp.eq.s32.totalorder %s27, 3
      %p140 = por %p138, %p139
      %p142 = scmp.ne.s32.totalorder %s125, %s141
      %p143 = scmp.eq.s32.totalorder %s27, 0
      %p144 = por %p142, %p143
      %s145 = ssub.s32 %s29, %s36
      %p146 = scmp.eq.s32.totalorder %s145, 0
      %s148 = sadd.s32 %s147, 1
      %s149 = scalar_select %p146, %s147, %s148
      %p152 = pneg %p146
      %p153 = scmp.eq.s32.totalorder %s21, 3
      %p154 = por %p152, %p153
      %p155 = scmp.ne.s32.totalorder %s147, %s150
      %p156 = scmp.eq.s32.totalorder %s21, 0
      %p157 = por %p155, %p156
      %p158 = scmp.ne.s32.totalorder %s147, %s150
      %p159 = scmp.eq.s32.totalorder %s26, 3
      %p160 = por %p158, %p159
      %p161 = scmp.ne.s32.totalorder %s150, %s151
      %p162 = scmp.eq.s32.totalorder %s26, 0
      %p163 = por %p161, %p162
      %p164 = scmp.ne.s32.totalorder %s150, %s151
      %p165 = scmp.eq.s32.totalorder %s27, 3
      %p166 = por %p164, %p165
      %p168 = scmp.ne.s32.totalorder %s151, %s167
      %p169 = scmp.eq.s32.totalorder %s27, 0
      %p170 = por %p168, %p169
      %s171 = ssub.s32 %s29, %s36
      %p172 = scmp.eq.s32.totalorder %s171, 0
      %s174 = sadd.s32 %s173, 1
      %s175 = scalar_select %p172, %s173, %s174
      %p178 = pneg %p172
      %p179 = scmp.eq.s32.totalorder %s21, 3
      %p180 = por %p178, %p179
      %p181 = scmp.ne.s32.totalorder %s173, %s176
      %p182 = scmp.eq.s32.totalorder %s21, 0
      %p183 = por %p181, %p182
      %p184 = scmp.ne.s32.totalorder %s173, %s176
      %p185 = scmp.eq.s32.totalorder %s26, 3
      %p186 = por %p184, %p185
      %p187 = scmp.ne.s32.totalorder %s176, %s177
      %p188 = scmp.eq.s32.totalorder %s26, 0
      %p189 = por %p187, %p188
      %p190 = scmp.ne.s32.totalorder %s176, %s177
      %p191 = scmp.eq.s32.totalorder %s27, 3
      %p192 = por %p190, %p191
      %p194 = scmp.ne.s32.totalorder %s177, %s193
      %p195 = scmp.eq.s32.totalorder %s27, 0
      %p196 = por %p194, %p195
      %s197 = ssub.s32 %s29, %s36
      %p198 = scmp.eq.s32.totalorder %s197, 0
      %s200 = sadd.s32 %s199, 1
      %s201 = scalar_select %p198, %s199, %s200
      %p204 = pneg %p198
      %p205 = scmp.eq.s32.totalorder %s21, 3
      %p206 = por %p204, %p205
      %p207 = scmp.ne.s32.totalorder %s199, %s202
      %p208 = scmp.eq.s32.totalorder %s21, 0
      %p209 = por %p207, %p208
      %p210 = scmp.ne.s32.totalorder %s199, %s202
      %p211 = scmp.eq.s32.totalorder %s26, 3
      %p212 = por %p210, %p211
      %p213 = scmp.ne.s32.totalorder %s202, %s203
      %p214 = scmp.eq.s32.totalorder %s26, 0
      %p215 = por %p213, %p214
      %p216 = scmp.ne.s32.totalorder %s202, %s203
      %p217 = scmp.eq.s32.totalorder %s27, 3
      %p218 = por %p216, %p217
      %p220 = scmp.ne.s32.totalorder %s203, %s219
      %p221 = scmp.eq.s32.totalorder %s27, 0
      %p222 = por %p220, %p221
      %s223 = ssub.s32 %s29, %s36
      %p224 = scmp.eq.s32.totalorder %s223, 0
      %s226 = sadd.s32 %s225, 1
      %s227 = scalar_select %p224, %s225, %s226
      %p230 = pneg %p224
      %p231 = scmp.eq.s32.totalorder %s21, 3
      %p232 = por %p230, %p231
      %p233 = scmp.ne.s32.totalorder %s225, %s228
      %p234 = scmp.eq.s32.totalorder %s21, 0
      %p235 = por %p233, %p234
      %p236 = scmp.ne.s32.totalorder %s225, %s228
      %p237 = scmp.eq.s32.totalorder %s26, 3
      %p238 = por %p236, %p237
      %p239 = scmp.ne.s32.totalorder %s228, %s229
      %p240 = scmp.eq.s32.totalorder %s26, 0
      %p241 = por %p239, %p240
      %p242 = scmp.ne.s32.totalorder %s228, %s229
      %p243 = scmp.eq.s32.totalorder %s27, 3
      %p244 = por %p242, %p243
      %p246 = scmp.ne.s32.totalorder %s229, %s245
      %p247 = scmp.eq.s32.totalorder %s27, 0
      %p248 = por %p246, %p247
      %s249 = ssub.s32 %s29, %s36
      %p250 = scmp.eq.s32.totalorder %s249, 0
      %s252 = sadd.s32 %s251, 1
      %s253 = scalar_select %p250, %s251, %s252
      %p256 = pneg %p250
      %p257 = scmp.eq.s32.totalorder %s21, 3
      %p258 = por %p256, %p257
      %p259 = scmp.ne.s32.totalorder %s251, %s254
      %p260 = scmp.eq.s32.totalorder %s21, 0
      %p261 = por %p259, %p260
      %p262 = scmp.ne.s32.totalorder %s251, %s254
      %p263 = scmp.eq.s32.totalorder %s26, 3
      %p264 = por %p262, %p263
      %p265 = scmp.ne.s32.totalorder %s254, %s255
      %p266 = scmp.eq.s32.totalorder %s26, 0
      %p267 = por %p265, %p266
      %p268 = scmp.ne.s32.totalorder %s254, %s255
      %p269 = scmp.eq.s32.totalorder %s27, 3
      %p270 = por %p268, %p269
      %p272 = scmp.ne.s32.totalorder %s255, %s271
      %p273 = scmp.eq.s32.totalorder %s27, 0
      %p274 = por %p272, %p273
      %s275 = ssub.s32 %s29, %s36
      %p276 = scmp.eq.s32.totalorder %s275, 0
      %s278 = sadd.s32 %s277, 1
      %s279 = scalar_select %p276, %s277, %s278
      %p282 = pneg %p276
      %p283 = scmp.eq.s32.totalorder %s21, 3
      %p284 = por %p282, %p283
      %p285 = scmp.ne.s32.totalorder %s277, %s280
      %p286 = scmp.eq.s32.totalorder %s21, 0
      %p287 = por %p285, %p286
      %p288 = scmp.ne.s32.totalorder %s277, %s280
      %p289 = scmp.eq.s32.totalorder %s26, 3
      %p290 = por %p288, %p289
      %p291 = scmp.ne.s32.totalorder %s280, %s281
      %p292 = scmp.eq.s32.totalorder %s26, 0
      %p293 = por %p291, %p292
      %p294 = scmp.ne.s32.totalorder %s280, %s281
      %p295 = scmp.eq.s32.totalorder %s27, 3
      %p296 = por %p294, %p295
      %p298 = scmp.ne.s32.totalorder %s281, %s297
      %p299 = scmp.eq.s32.totalorder %s27, 0
      %p300 = por %p298, %p299
      %s301 = ssub.s32 %s29, %s36
      %p302 = scmp.eq.s32.totalorder %s301, 0
      %s304 = sadd.s32 %s303, 1
      %s305 = scalar_select %p302, %s303, %s304
      %p308 = pneg %p302
      %p309 = scmp.eq.s32.totalorder %s21, 3
      %p310 = por %p308, %p309
      %p311 = scmp.ne.s32.totalorder %s303, %s306
      %p312 = scmp.eq.s32.totalorder %s21, 0
      %p313 = por %p311, %p312
      %p314 = scmp.ne.s32.totalorder %s303, %s306
      %p315 = scmp.eq.s32.totalorder %s26, 3
      %p316 = por %p314, %p315
      %p317 = scmp.ne.s32.totalorder %s306, %s307
      %p318 = scmp.eq.s32.totalorder %s26, 0
      %p319 = por %p317, %p318
      %p320 = scmp.ne.s32.totalorder %s306, %s307
      %p321 = scmp.eq.s32.totalorder %s27, 3
      %p322 = por %p320, %p321
      %p324 = scmp.ne.s32.totalorder %s307, %s323
      %p325 = scmp.eq.s32.totalorder %s27, 0
      %p326 = por %p324, %p325
      %s327 = ssub.s32 %s29, %s36
      %p328 = scmp.eq.s32.totalorder %s327, 0
      %s330 = sadd.s32 %s329, 1
      %s331 = scalar_select %p328, %s329, %s330
      %p334 = pneg %p328
      %p335 = scmp.eq.s32.totalorder %s21, 3
      %p336 = por %p334, %p335
      %p337 = scmp.ne.s32.totalorder %s329, %s332
      %p338 = scmp.eq.s32.totalorder %s21, 0
      %p339 = por %p337, %p338
      %p340 = scmp.ne.s32.totalorder %s329, %s332
      %p341 = scmp.eq.s32.totalorder %s26, 3
      %p342 = por %p340, %p341
      %p343 = scmp.ne.s32.totalorder %s332, %s333
      %p344 = scmp.eq.s32.totalorder %s26, 0
      %p345 = por %p343, %p344
      %p346 = scmp.ne.s32.totalorder %s332, %s333
      %p347 = scmp.eq.s32.totalorder %s27, 3
      %p348 = por %p346, %p347
      %p350 = scmp.ne.s32.totalorder %s333, %s349
      %p351 = scmp.eq.s32.totalorder %s27, 0
      %p352 = por %p350, %p351
      %s353 = ssub.s32 %s28, %s40
      %p354 = scmp.eq.s32.totalorder %s353, 0
      %s356 = sadd.s32 %s355, 1
      %s357 = scalar_select %p354, %s355, %s356
      %p360 = pneg %p354
      %p361 = scmp.eq.s32.totalorder %s21, 3
      %p362 = por %p360, %p361
      %p363 = scmp.ne.s32.totalorder %s355, %s358
      %p364 = scmp.eq.s32.totalorder %s21, 0
      %p365 = por %p363, %p364
      %p366 = scmp.ne.s32.totalorder %s355, %s358
      %p367 = scmp.eq.s32.totalorder %s26, 3
      %p368 = por %p366, %p367
      %p369 = scmp.ne.s32.totalorder %s358, %s359
      %p370 = scmp.eq.s32.totalorder %s26, 0
      %p371 = por %p369, %p370
      %p372 = scmp.ne.s32.totalorder %s358, %s359
      %p373 = scmp.eq.s32.totalorder %s27, 3
      %p374 = por %p372, %p373
      %p376 = scmp.ne.s32.totalorder %s359, %s375
      %p377 = scmp.eq.s32.totalorder %s27, 0
      %p378 = por %p376, %p377
      %p379 = scmp.le.s32.totalorder 1, %s21
      %p380 = scmp.lt.s32.totalorder %s21, 5
      %p381 = pnand %p379, %p380
      %p382 = pneg %p381
      // Predicated region
      $region9: #{transformer_layer_forward.1} parent=5 // pred_check
        _
      $region10: #{transformer_layer_forward.1} parent=5 // pred_check_branch
        %384 = sbr.rel (%p381) target = $region12
      $region11: #{transformer_layer_forward.1} parent=5 // pred_region
        %s385 = ssub.s32 %s21, 1
      $region12: #{transformer_layer_forward.1} parent=5 // pred_fallthru
        _
      %p386 = scmp.lt.s32.totalorder %s21, 4
      // Predicated region
      $region13: #{transformer_layer_forward.1} parent=5 // pred_check
        %p387 = pneg %p386
      $region14: #{transformer_layer_forward.1} parent=5 // pred_check_branch
        %389 = sbr.rel (%p387) target = $region16
      $region15: #{transformer_layer_forward.1} parent=5 // pred_region
        // Predicated region
        $region17: #{transformer_layer_forward.1} parent=15 // pred_check
          %p390 = pneg %p53
        $region18: #{transformer_layer_forward.1} parent=15 // pred_check_branch
          %392 = sbr.rel (%p390) target = $region20
        $region19: #{transformer_layer_forward.1} parent=15 // pred_region
          %p393 = scmp.lt.s32.totalorder %s28, 1
          %s394 = scalar_select %p393, %s28, 1
          %s395 = smul.addr %s394, 8
          %s396 = scalar_lea.vmem %s0, %s395
        $region20: #{transformer_layer_forward.1} parent=15 // pred_fallthru
          _
        // Predicated region
        $region21: #{transformer_layer_forward.1} parent=15 // pred_check
          %p397 = pneg %p79
        $region22: #{transformer_layer_forward.1} parent=15 // pred_check_branch
          %399 = sbr.rel (%p397) target = $region24
        $region23: #{transformer_layer_forward.1} parent=15 // pred_region
          %p400 = scmp.lt.s32.totalorder %s29, 1
          %s401 = scalar_select %p400, %s29, 1
          %s402 = scalar_lea.vmem %s1, %s401
        $region24: #{transformer_layer_forward.1} parent=15 // pred_fallthru
          _
        // Predicated region
        $region25: #{transformer_layer_forward.1} parent=15 // pred_check
          %p403 = pneg %p105
        $region26: #{transformer_layer_forward.1} parent=15 // pred_check_branch
          %405 = sbr.rel (%p403) target = $region28
        $region27: #{transformer_layer_forward.1} parent=15 // pred_region
          %p406 = scmp.lt.s32.totalorder %s29, 1
          %s407 = scalar_select %p406, %s29, 1
          %s408 = scalar_lea.vmem %s2, %s407
        $region28: #{transformer_layer_forward.1} parent=15 // pred_fallthru
          _
        // Predicated region
        $region29: #{transformer_layer_forward.1} parent=15 // pred_check
          %p409 = pneg %p131
        $region30: #{transformer_layer_forward.1} parent=15 // pred_check_branch
          %411 = sbr.rel (%p409) target = $region32
        $region31: #{transformer_layer_forward.1} parent=15 // pred_region
          %p412 = scmp.lt.s32.totalorder %s29, 1
          %s413 = scalar_select %p412, %s29, 1
          %s414 = smul.addr %s413, 4
          %s415 = smul.addr %s414, 4
          %s416 = scalar_lea.vmem %s3, %s415
        $region32: #{transformer_layer_forward.1} parent=15 // pred_fallthru
          _
        // Predicated region
        $region33: #{transformer_layer_forward.1} parent=15 // pred_check
          %p417 = pneg %p157
        $region34: #{transformer_layer_forward.1} parent=15 // pred_check_branch
          %419 = sbr.rel (%p417) target = $region36
        $region35: #{transformer_layer_forward.1} parent=15 // pred_region
          %p420 = scmp.lt.s32.totalorder %s29, 1
          %s421 = scalar_select %p420, %s29, 1
          %s422 = smul.addr %s421, 4
          %s423 = smul.addr %s422, 4
          %s424 = scalar_lea.vmem %s4, %s423
        $region36: #{transformer_layer_forward.1} parent=15 // pred_fallthru
          _
        // Predicated region
        $region37: #{transformer_layer_forward.1} parent=15 // pred_check
          %p425 = pneg %p183
        $region38: #{transformer_layer_forward.1} parent=15 // pred_check_branch
          %427 = sbr.rel (%p425) target = $region40
        $region39: #{transformer_layer_forward.1} parent=15 // pred_region
          %p428 = scmp.lt.s32.totalorder %s29, 1
          %s429 = scalar_select %p428, %s29, 1
          %s430 = scalar_lea.vmem %s5, %s429
        $region40: #{transformer_layer_forward.1} parent=15 // pred_fallthru
          _
        // Predicated region
        $region41: #{transformer_layer_forward.1} parent=15 // pred_check
          %p431 = pneg %p209
        $region42: #{transformer_layer_forward.1} parent=15 // pred_check_branch
          %433 = sbr.rel (%p431) target = $region44
        $region43: #{transformer_layer_forward.1} parent=15 // pred_region
          %p434 = scmp.lt.s32.totalorder %s29, 1
          %s435 = scalar_select %p434, %s29, 1
          %s436 = scalar_lea.vmem %s6, %s435
        $region44: #{transformer_layer_forward.1} parent=15 // pred_fallthru
          _
        // Predicated region
        $region45: #{transformer_layer_forward.1} parent=15 // pred_check
          %p437 = pneg %p235
        $region46: #{transformer_layer_forward.1} parent=15 // pred_check_branch
          %439 = sbr.rel (%p437) target = $region48
        $region47: #{transformer_layer_forward.1} parent=15 // pred_region
          %p440 = scmp.lt.s32.totalorder %s29, 1
          %s441 = scalar_select %p440, %s29, 1
          %s442 = scalar_lea.vmem %s7, %s441
        $region48: #{transformer_layer_forward.1} parent=15 // pred_fallthru
          _
        // Predicated region
        $region49: #{transformer_layer_forward.1} parent=15 // pred_check
          %p443 = pneg %p261
        $region50: #{transformer_layer_forward.1} parent=15 // pred_check_branch
          %445 = sbr.rel (%p443) target = $region52
        $region51: #{transformer_layer_forward.1} parent=15 // pred_region
          %p446 = scmp.lt.s32.totalorder %s29, 1
          %s447 = scalar_select %p446, %s29, 1
          %s448 = smul.addr %s447, 4
          %s449 = smul.addr %s448, 4
          %s450 = scalar_lea.vmem %s8, %s449
        $region52: #{transformer_layer_forward.1} parent=15 // pred_fallthru
          _
        // Predicated region
        $region53: #{transformer_layer_forward.1} parent=15 // pred_check
          %p451 = pneg %p287
        $region54: #{transformer_layer_forward.1} parent=15 // pred_check_branch
          %453 = sbr.rel (%p451) target = $region56
        $region55: #{transformer_layer_forward.1} parent=15 // pred_region
          %p454 = scmp.lt.s32.totalorder %s29, 1
          %s455 = scalar_select %p454, %s29, 1
          %s456 = scalar_lea.vmem %s9, %s455
        $region56: #{transformer_layer_forward.1} parent=15 // pred_fallthru
          _
        // Predicated region
        $region57: #{transformer_layer_forward.1} parent=15 // pred_check
          %p457 = pneg %p313
        $region58: #{transformer_layer_forward.1} parent=15 // pred_check_branch
          %459 = sbr.rel (%p457) target = $region60
        $region59: #{transformer_layer_forward.1} parent=15 // pred_region
          %p460 = scmp.lt.s32.totalorder %s29, 1
          %s461 = scalar_select %p460, %s29, 1
          %s462 = smul.addr %s461, 16
          %s463 = smul.addr %s462, 4
          %s464 = scalar_lea.vmem %s10, %s463
        $region60: #{transformer_layer_forward.1} parent=15 // pred_fallthru
          _
        // Predicated region
        $region61: #{transformer_layer_forward.1} parent=15 // pred_check
          %p465 = pneg %p339
        $region62: #{transformer_layer_forward.1} parent=15 // pred_check_branch
          %467 = sbr.rel (%p465) target = $region64
        $region63: #{transformer_layer_forward.1} parent=15 // pred_region
          %p468 = scmp.lt.s32.totalorder %s29, 1
          %s469 = scalar_select %p468, %s29, 1
          %s470 = scalar_lea.vmem %s11, %s469
        $region64: #{transformer_layer_forward.1} parent=15 // pred_fallthru
          _
      $region16: #{transformer_layer_forward.1} parent=5 // pred_fallthru
        _
      %p471 = scmp.le.s32.totalorder 1, %s21
      %p472 = scmp.lt.s32.totalorder %s21, 5
      %p473 = pnand %p471, %p472
      %p474 = pneg %p473
      // Predicated region
      $region65: #{transformer_layer_forward.1} parent=5 // pred_check
        _
      $region66: #{transformer_layer_forward.1} parent=5 // pred_check_branch
        %476 = sbr.rel (%p473) target = $region68
      $region67: #{transformer_layer_forward.1} parent=5 // pred_region
        %s477 = ssub.s32 %s21, 1
        %p478 = scmp.lt.s32.totalorder %s30, 1
        %s479 = scalar_select %p478, %s30, 1
        %s480 = smul.addr %s479, 8
        %s481 = scalar_lea.vmem %s0, %s480
        %p482 = pneg %p59
        %p483 = pneg %p56
        %p484 = scmp.lt.s32.totalorder %s31, 1
        %s485 = scalar_select %p484, %s31, 1
        %s486 = scalar_lea.vmem %s1, %s485
        %p487 = pneg %p85
        %p488 = pneg %p82
        %p489 = scmp.lt.s32.totalorder %s31, 1
        %s490 = scalar_select %p489, %s31, 1
        %s491 = scalar_lea.vmem %s2, %s490
        %p492 = pneg %p111
        %p493 = pneg %p108
        %p494 = scmp.lt.s32.totalorder %s31, 1
        %s495 = scalar_select %p494, %s31, 1
        %s496 = smul.addr %s495, 4
        %s497 = smul.addr %s496, 4
        %s498 = scalar_lea.vmem %s3, %s497
        %p499 = pneg %p137
        %p500 = pneg %p134
        %p501 = scmp.lt.s32.totalorder %s31, 1
        %s502 = scalar_select %p501, %s31, 1
        %s503 = smul.addr %s502, 4
        %s504 = smul.addr %s503, 4
        %s505 = scalar_lea.vmem %s4, %s504
        %p506 = pneg %p163
        %p507 = pneg %p160
        %p508 = scmp.lt.s32.totalorder %s31, 1
        %s509 = scalar_select %p508, %s31, 1
        %s510 = scalar_lea.vmem %s5, %s509
        %p511 = pneg %p189
        %p512 = pneg %p186
        %p513 = scmp.lt.s32.totalorder %s31, 1
        %s514 = scalar_select %p513, %s31, 1
        %s515 = scalar_lea.vmem %s6, %s514
        %p516 = pneg %p215
        %p517 = pneg %p212
        %p518 = scmp.lt.s32.totalorder %s31, 1
        %s519 = scalar_select %p518, %s31, 1
        %s520 = scalar_lea.vmem %s7, %s519
        %p521 = pneg %p241
        %p522 = pneg %p238
        %p523 = scmp.lt.s32.totalorder %s31, 1
        %s524 = scalar_select %p523, %s31, 1
        %s525 = smul.addr %s524, 4
        %s526 = smul.addr %s525, 4
        %s527 = scalar_lea.vmem %s8, %s526
        %p528 = pneg %p267
        %p529 = pneg %p264
        %p530 = scmp.lt.s32.totalorder %s31, 1
        %s531 = scalar_select %p530, %s31, 1
        %s532 = scalar_lea.vmem %s9, %s531
        %p533 = pneg %p293
        %p534 = pneg %p290
        %p535 = scmp.lt.s32.totalorder %s31, 1
        %s536 = scalar_select %p535, %s31, 1
        %s537 = smul.addr %s536, 16
        %s538 = smul.addr %s537, 4
        %s539 = scalar_lea.vmem %s10, %s538
        %p540 = pneg %p319
        %p541 = pneg %p316
        %p542 = scmp.lt.s32.totalorder %s31, 1
        %s543 = scalar_select %p542, %s31, 1
        %s544 = scalar_lea.vmem %s11, %s543
        %p545 = pneg %p345
        %p546 = pneg %p342
        %p547 = pneg %p371
        %p548 = pneg %p368
        %s549 = sand.u32 %s358, 1
        %s550 = scalar_lea.sflag [#allocation5], %s549
        %s551 = sand.u32 %s358, 1
        %s552 = smul.addr %s551, 8
        %s553 = scalar_lea.vmem [#allocation4], %s552
        %p554 = scmp.lt.s32.totalorder %s30, 1
        %s555 = scalar_select %p554, %s30, 1
        %s556 = smul.addr %s555, 8
        %s557 = scalar_lea.vmem %s0, %s556
        %p558 = scmp.lt.s32.totalorder %s31, 1
        %s559 = scalar_select %p558, %s31, 1
        %s560 = scalar_lea.vmem %s1, %s559
        %p561 = scmp.lt.s32.totalorder %s31, 1
        %s562 = scalar_select %p561, %s31, 1
        %s563 = scalar_lea.vmem %s2, %s562
        %p564 = scmp.lt.s32.totalorder %s31, 1
        %s565 = scalar_select %p564, %s31, 1
        %s566 = smul.addr %s565, 4
        %s567 = smul.addr %s566, 4
        %s568 = scalar_lea.vmem %s3, %s567
        %p569 = scmp.lt.s32.totalorder %s31, 1
        %s570 = scalar_select %p569, %s31, 1
        %s571 = smul.addr %s570, 4
        %s572 = smul.addr %s571, 4
        %s573 = scalar_lea.vmem %s4, %s572
        %p574 = scmp.lt.s32.totalorder %s31, 1
        %s575 = scalar_select %p574, %s31, 1
        %s576 = scalar_lea.vmem %s5, %s575
        %p577 = scmp.lt.s32.totalorder %s31, 1
        %s578 = scalar_select %p577, %s31, 1
        %s579 = scalar_lea.vmem %s6, %s578
        %p580 = scmp.lt.s32.totalorder %s31, 1
        %s581 = scalar_select %p580, %s31, 1
        %s582 = scalar_lea.vmem %s7, %s581
        %p583 = scmp.lt.s32.totalorder %s31, 1
        %s584 = scalar_select %p583, %s31, 1
        %s585 = smul.addr %s584, 4
        %s586 = smul.addr %s585, 4
        %s587 = scalar_lea.vmem %s8, %s586
        %p588 = scmp.lt.s32.totalorder %s31, 1
        %s589 = scalar_select %p588, %s31, 1
        %s590 = scalar_lea.vmem %s9, %s589
        %p591 = scmp.lt.s32.totalorder %s31, 1
        %s592 = scalar_select %p591, %s31, 1
        %s593 = smul.addr %s592, 16
        %s594 = smul.addr %s593, 4
        %s595 = scalar_lea.vmem %s10, %s594
        %p596 = scmp.lt.s32.totalorder %s31, 1
        %s597 = scalar_select %p596, %s31, 1
        %s598 = scalar_lea.vmem %s11, %s597
        %p600 = scmp.eq.s32.totalorder %s31, 0
        // Predicated region
        $region69: #{transformer_layer_forward.1} parent=67 // pred_check
          %p601 = pneg %p600
        $region70: #{transformer_layer_forward.1} parent=67 // pred_check_branch
          %603 = sbr.rel (%p601) target = $region72
        $region71: #{transformer_layer_forward.1} parent=67 // pred_region
          %v604 = vld [vmem:[%s557] sm:$0xff]
          %vm605 = vcmask 261120
          %606 = vst.msk [vmem:[#allocation2] sm:$0xff] %vm605, %v604
        $region72: #{transformer_layer_forward.1} parent=67 // pred_fallthru
          _
        %v607 = vld [vmem:[#allocation2] sm:$0xff]
        %v608 = vld [vmem:[%s560] sm:$0x1]
        %v609 = vld [vmem:[%s563] sm:$0x1]
        %vm610 = vcmask 261120
        %v611 = vsel %vm610, %v607, 0.0
        %612 = vadd.xlane.f32.xlu0 %v611
        %v613 = vpop.xlane.xlu0 %612
        %v614 = vrcp.pop 32.0
        %v615 = vmul.f32 32.0, %v614
        %v616 = vsub.f32 1.0, %v615
        %v617 = vmul.f32 %v614, %v616
        %v618 = vadd.f32 %v614, %v617
        %vm619 = vweird.f32 %v614
        %v620 = vsel %vm619, %v614, %v618
        %v621 = vmul.f32 %v613, %v620
        %v622 = vsub.f32 %v607, %v621
        %v623 = vmul.f32 %v622, %v622
        %v624 = vsel %vm610, %v623, 0.0
        %625 = vadd.xlane.f32.xlu0 %v624
        %v626 = vpop.xlane.xlu0 %625
        %v627 = vmul.f32 %v626, %v620
        %v628 = vadd.f32 %v627, 1e-05
        %v629 = vrsqrt.pop %v628
        %v630 = vmul.f32 %v629, %v628
        %v631 = vmul.f32 %v630, %v629
        %v632 = vmul.f32 0.5, %v631
        %v633 = vsub.f32 1.5, %v632
        %v634 = vmul.f32 %v629, %v633
        %vm635 = vweird.f32 %v628
        %vm636 = vweird.f32 %v629
        %vm637 = vmor %vm635, %vm636
        %v638 = vsel %vm637, %v629, %v634
        %v639 = vmul.f32 %v622, %v638
        %v641 = vperm.slane %v608, 0
        %v643 = vmul.f32 %v639, %v641
        %v645 = vperm.slane %v609, 0
        %v647 = vadd.f32 %v643, %v645
        %v648 = vpack.c.bf16 %v647, %v647
        %v649 = vld [vmem:[%s568] sm:$0xf]
        %v650 = vld [vmem:[%s568 + $0x4] sm:$0xf]
        %v651 = vld [vmem:[%s568 + $0x8] sm:$0xf]
        %v652 = vld [vmem:[%s568 + $0xc] sm:$0xf]
        %v657 = vunpack.c.l.b16 %v649
        %v658 = vunpack.c.l.b16 %v650
        %v659 = vunpack.c.l.b16 %v651
        %v660 = vunpack.c.l.b16 %v652
        %v661 = vpack.c.b16 %v658, %v657
        %v662 = vpack.c.b16 %v660, %v659
        %v666 = vsel %vm610, %v648, 0
        %668 = vmatpush.bf16.msra.mxu0 0
        %669 = vmatpush.bf16.msra.mxu0 0
        %670 = vmatpush.bf16.msra.mxu0 0
        %671 = vmatpush.bf16.msra.mxu0 0
        %672 = vmatpush.bf16.msra.mxu0 0
        %673 = vmatpush.bf16.msra.mxu0 0
        %674 = vmatpush.bf16.msra.mxu0 %v662
        %675 = vmatpush.bf16.msra.mxu0 %v661
        %676 = vmatmul.bf16.gmra.mxu0 %v666
        %v677 = vpop.f32.mrf.mxu0
        %v678 = vadd.f32 0.0, %v677
        %v679 = vpop.f32.mrf.mxu0
        %680 = vdwg.mxu0
        %v681 = vpack.c.bf16 %v678, %v678
        %683 = vrot.lane.b32.xlu0 %v681, 120
        %v684 = vpop.permute.xlu0 %683
        %685 = vrot.lane.b32.xlu0 %v681, 112
        %v686 = vpop.permute.xlu0 %685
        %687 = vrot.lane.b32.xlu0 %v681, 104
        %v688 = vpop.permute.xlu0 %687
        %689 = vrot.lane.b32.xlu0 %v681, 96
        %v690 = vpop.permute.xlu0 %689
        %691 = vrot.lane.b32.xlu0 %v681, 88
        %v692 = vpop.permute.xlu0 %691
        %693 = vrot.lane.b32.xlu0 %v681, 80
        %v694 = vpop.permute.xlu0 %693
        %695 = vrot.lane.b32.xlu0 %v681, 72
        %v696 = vpop.permute.xlu0 %695
        %697 = vrot.lane.b32.xlu0 %v681, 64
        %v698 = vpop.permute.xlu0 %697
        %699 = vrot.lane.b32.xlu0 %v681, 56
        %v700 = vpop.permute.xlu0 %699
        %701 = vrot.lane.b32.xlu0 %v681, 48
        %v702 = vpop.permute.xlu0 %701
        %703 = vrot.lane.b32.xlu0 %v681, 40
        %v704 = vpop.permute.xlu0 %703
        %vm705 = vcmask 64512
        %v707 = vsel %vm705, %v681, 0
        %v710 = vsel %vm705, %v690, 0
        %712 = vmatpush.bf16.xpose.msra.mxu0 0
        %713 = vmatpush.bf16.xpose.msra.mxu0 0
        %714 = vmatpush.bf16.xpose.msra.mxu0 0
        %715 = vmatpush.bf16.xpose.msra.mxu0 0
        %716 = vmatpush.bf16.xpose.msra.mxu0 0
        %717 = vmatpush.bf16.xpose.msra.mxu0 0
        %718 = vmatpush.bf16.xpose.msra.mxu0 0
        %719 = vmatpush.bf16.xpose.msra.mxu0 %v710
        %720 = vmatmul.bf16.gmra.mxu0 %v707
        %v721 = vpop.f32.mrf.mxu0
        %v722 = vadd.f32 0.0, %v721
        %v723 = vpop.f32.mrf.mxu0
        %724 = vdwg.mxu0
        %v726 = vsel %vm705, %v684, 0
        %v729 = vsel %vm705, %v692, 0
        %731 = vmatpush.bf16.xpose.msra.mxu0 0
        %732 = vmatpush.bf16.xpose.msra.mxu0 0
        %733 = vmatpush.bf16.xpose.msra.mxu0 0
        %734 = vmatpush.bf16.xpose.msra.mxu0 0
        %735 = vmatpush.bf16.xpose.msra.mxu0 0
        %736 = vmatpush.bf16.xpose.msra.mxu0 0
        %737 = vmatpush.bf16.xpose.msra.mxu0 0
        %738 = vmatpush.bf16.xpose.msra.mxu0 %v729
        %739 = vmatmul.bf16.gmra.mxu0 %v726
        %v740 = vpop.f32.mrf.mxu0
        %v741 = vadd.f32 0.0, %v740
        %v742 = vpop.f32.mrf.mxu0
        %743 = vdwg.mxu0
        %v745 = vsel %vm705, %v686, 0
        %v748 = vsel %vm705, %v694, 0
        %750 = vmatpush.bf16.xpose.msra.mxu0 0
        %751 = vmatpush.bf16.xpose.msra.mxu0 0
        %752 = vmatpush.bf16.xpose.msra.mxu0 0
        %753 = vmatpush.bf16.xpose.msra.mxu0 0
        %754 = vmatpush.bf16.xpose.msra.mxu0 0
        %755 = vmatpush.bf16.xpose.msra.mxu0 0
        %756 = vmatpush.bf16.xpose.msra.mxu0 0
        %757 = vmatpush.bf16.xpose.msra.mxu0 %v748
        %758 = vmatmul.bf16.gmra.mxu0 %v745
        %v759 = vpop.f32.mrf.mxu0
        %v760 = vadd.f32 0.0, %v759
        %v761 = vpop.f32.mrf.mxu0
        %762 = vdwg.mxu0
        %v764 = vsel %vm705, %v688, 0
        %v767 = vsel %vm705, %v696, 0
        %769 = vmatpush.bf16.xpose.msra.mxu0 0
        %770 = vmatpush.bf16.xpose.msra.mxu0 0
        %771 = vmatpush.bf16.xpose.msra.mxu0 0
        %772 = vmatpush.bf16.xpose.msra.mxu0 0
        %773 = vmatpush.bf16.xpose.msra.mxu0 0
        %774 = vmatpush.bf16.xpose.msra.mxu0 0
        %775 = vmatpush.bf16.xpose.msra.mxu0 0
        %776 = vmatpush.bf16.xpose.msra.mxu0 %v767
        %777 = vmatmul.bf16.gmra.mxu0 %v764
        %v778 = vpop.f32.mrf.mxu0
        %v779 = vadd.f32 0.0, %v778
        %v780 = vpop.f32.mrf.mxu0
        %781 = vdwg.mxu0
        %v782 = vsel %vm705, %v722, -inf
        %783 = vmax.xlane.f32.xlu0 %v782
        %v784 = vpop.xlane.xlu0 %783
        %v785 = vsel %vm705, %v741, -inf
        %786 = vmax.xlane.f32.xlu0 %v785
        %v787 = vpop.xlane.xlu0 %786
        %v788 = vsel %vm705, %v760, -inf
        %789 = vmax.xlane.f32.xlu0 %v788
        %v790 = vpop.xlane.xlu0 %789
        %v791 = vsel %vm705, %v779, -inf
        %792 = vmax.xlane.f32.xlu0 %v791
        %v793 = vpop.xlane.xlu0 %792
        %v794 = vsub.f32 %v722, %v784
        %v795 = vsub.f32 %v741, %v787
        %v796 = vsub.f32 %v760, %v790
        %v797 = vsub.f32 %v779, %v793
        %v798 = vmul.f32 %v794, 1.442695
        %v799 = vpow.pop %v798
        %v800 = vmul.f32 %v795, 1.442695
        %v801 = vpow.pop %v800
        %v802 = vmul.f32 %v796, 1.442695
        %v803 = vpow.pop %v802
        %v804 = vmul.f32 %v797, 1.442695
        %v805 = vpow.pop %v804
        %v806 = vsel %vm705, %v799, 0.0
        %807 = vadd.xlane.f32.xlu0 %v806
        %v808 = vpop.xlane.xlu0 %807
        %v809 = vsel %vm705, %v801, 0.0
        %810 = vadd.xlane.f32.xlu0 %v809
        %v811 = vpop.xlane.xlu0 %810
        %v812 = vsel %vm705, %v803, 0.0
        %813 = vadd.xlane.f32.xlu0 %v812
        %v814 = vpop.xlane.xlu0 %813
        %v815 = vsel %vm705, %v805, 0.0
        %816 = vadd.xlane.f32.xlu0 %v815
        %v817 = vpop.xlane.xlu0 %816
        %v818 = vrcp.pop %v808
        %v819 = vrcp.pop %v811
        %v820 = vrcp.pop %v814
        %v821 = vrcp.pop %v817
        %v822 = vmul.f32 %v799, %v818
        %v823 = vmul.f32 %v801, %v819
        %v824 = vmul.f32 %v803, %v820
        %v825 = vmul.f32 %v805, %v821
        %v826 = vpack.c.bf16 %v822, %v822
        %v827 = vpack.c.bf16 %v823, %v823
        %v828 = vpack.c.bf16 %v824, %v824
        %v829 = vpack.c.bf16 %v825, %v825
        %v831 = vsel %vm705, %v826, 0
        %vm833 = vcmask 1043456
        %v835 = vsel %vm833, %v698, 0
        %837 = vmatpush.bf16.msra.mxu0 0
        %838 = vmatpush.bf16.msra.mxu0 0
        %839 = vmatpush.bf16.msra.mxu0 0
        %840 = vmatpush.bf16.msra.mxu0 0
        %841 = vmatpush.bf16.msra.mxu0 0
        %842 = vmatpush.bf16.msra.mxu0 0
        %843 = vmatpush.bf16.msra.mxu0 0
        %844 = vmatpush.bf16.msra.mxu0 %v835
        %845 = vmatmul.bf16.gmra.mxu0 %v831
        %v846 = vpop.f32.mrf.mxu0
        %v847 = vadd.f32 0.0, %v846
        %v848 = vpop.f32.mrf.mxu0
        %849 = vdwg.mxu0
        %v851 = vsel %vm705, %v827, 0
        %v854 = vsel %vm833, %v700, 0
        %856 = vmatpush.bf16.msra.mxu0 0
        %857 = vmatpush.bf16.msra.mxu0 0
        %858 = vmatpush.bf16.msra.mxu0 0
        %859 = vmatpush.bf16.msra.mxu0 0
        %860 = vmatpush.bf16.msra.mxu0 0
        %861 = vmatpush.bf16.msra.mxu0 0
        %862 = vmatpush.bf16.msra.mxu0 0
        %863 = vmatpush.bf16.msra.mxu0 %v854
        %864 = vmatmul.bf16.gmra.mxu0 %v851
        %v865 = vpop.f32.mrf.mxu0
        %v866 = vadd.f32 0.0, %v865
        %v867 = vpop.f32.mrf.mxu0
        %868 = vdwg.mxu0
        %v870 = vsel %vm705, %v828, 0
        %v873 = vsel %vm833, %v702, 0
        %875 = vmatpush.bf16.msra.mxu0 0
        %876 = vmatpush.bf16.msra.mxu0 0
        %877 = vmatpush.bf16.msra.mxu0 0
        %878 = vmatpush.bf16.msra.mxu0 0
        %879 = vmatpush.bf16.msra.mxu0 0
        %880 = vmatpush.bf16.msra.mxu0 0
        %881 = vmatpush.bf16.msra.mxu0 0
        %882 = vmatpush.bf16.msra.mxu0 %v873
        %883 = vmatmul.bf16.gmra.mxu0 %v870
        %v884 = vpop.f32.mrf.mxu0
        %v885 = vadd.f32 0.0, %v884
        %v886 = vpop.f32.mrf.mxu0
        %887 = vdwg.mxu0
        %v889 = vsel %vm705, %v829, 0
        %v892 = vsel %vm833, %v704, 0
        %894 = vmatpush.bf16.msra.mxu0 0
        %895 = vmatpush.bf16.msra.mxu0 0
        %896 = vmatpush.bf16.msra.mxu0 0
        %897 = vmatpush.bf16.msra.mxu0 0
        %898 = vmatpush.bf16.msra.mxu0 0
        %899 = vmatpush.bf16.msra.mxu0 0
        %900 = vmatpush.bf16.msra.mxu0 0
        %901 = vmatpush.bf16.msra.mxu0 %v892
        %902 = vmatmul.bf16.gmra.mxu0 %v889
        %v903 = vpop.f32.mrf.mxu0
        %v904 = vadd.f32 0.0, %v903
        %v905 = vpop.f32.mrf.mxu0
        %906 = vdwg.mxu0
        %v907 = vpack.c.bf16 %v847, %v847
        %v908 = vpack.c.bf16 %v866, %v866
        %v909 = vpack.c.bf16 %v885, %v885
        %v910 = vpack.c.bf16 %v904, %v904
        %vm911 = vcmask 60416
        %912 = vst.msk [vmem:[#allocation3] sm:$0xf] %vm911, %v907
        %914 = vrot.lane.b32.xlu0 %v908, 8
        %v915 = vpop.permute.xlu0 %914
        %vm917 = vcmask 126016
        %918 = vst.msk [vmem:[#allocation3] sm:$0xf] %vm917, %v915
        %920 = vrot.lane.b32.xlu0 %v909, 16
        %v921 = vpop.permute.xlu0 %920
        %vm923 = vcmask 191616
        %924 = vst.msk [vmem:[#allocation3] sm:$0xf] %vm923, %v921
        %926 = vrot.lane.b32.xlu0 %v910, 24
        %v927 = vpop.permute.xlu0 %926
        %vm929 = vcmask 257216
        %930 = vst.msk [vmem:[#allocation3] sm:$0xf] %vm929, %v927
        %v931 = vld [vmem:[#allocation3] sm:$0xf]
        %v932 = vld [vmem:[%s573] sm:$0xf]
        %v933 = vld [vmem:[%s573 + $0x4] sm:$0xf]
        %v934 = vld [vmem:[%s573 + $0x8] sm:$0xf]
        %v935 = vld [vmem:[%s573 + $0xc] sm:$0xf]
        %v936 = vld [vmem:[%s576] sm:$0x1]
        %v938 = vperm.slane %v936, 0
        %v944 = vunpack.c.l.b16 %v932
        %v945 = vunpack.c.l.b16 %v933
        %v946 = vunpack.c.l.b16 %v934
        %v947 = vunpack.c.l.b16 %v935
        %v948 = vpack.c.b16 %v945, %v944
        %v949 = vpack.c.b16 %v947, %v946
        %v953 = vsel %vm610, %v931, 0
        %955 = vmatpush.bf16.msra.mxu0 0
        %956 = vmatpush.bf16.msra.mxu0 0
        %957 = vmatpush.bf16.msra.mxu0 0
        %958 = vmatpush.bf16.msra.mxu0 0
        %959 = vmatpush.bf16.msra.mxu0 0
        %960 = vmatpush.bf16.msra.mxu0 0
        %961 = vmatpush.bf16.msra.mxu0 %v949
        %962 = vmatpush.bf16.msra.mxu0 %v948
        %963 = vmatmul.bf16.gmra.mxu0 %v953
        %v964 = vpop.f32.mrf.mxu0
        %v965 = vadd.f32 %v938, %v964
        %v966 = vpop.f32.mrf.mxu0
        %967 = vdwg.mxu0
        %v968 = vadd.f32 %v607, %v965
        %v969 = vld [vmem:[%s579] sm:$0x1]
        %v970 = vld [vmem:[%s582] sm:$0x1]
        %v971 = vsel %vm610, %v968, 0.0
        %972 = vadd.xlane.f32.xlu0 %v971
        %v973 = vpop.xlane.xlu0 %972
        %v974 = vmul.f32 %v973, %v620
        %v975 = vsub.f32 %v968, %v974
        %v976 = vmul.f32 %v975, %v975
        %v977 = vsel %vm610, %v976, 0.0
        %978 = vadd.xlane.f32.xlu0 %v977
        %v979 = vpop.xlane.xlu0 %978
        %v980 = vmul.f32 %v979, %v620
        %v981 = vadd.f32 %v980, 1e-05
        %v982 = vrsqrt.pop %v981
        %v983 = vmul.f32 %v982, %v981
        %v984 = vmul.f32 %v983, %v982
        %v985 = vmul.f32 0.5, %v984
        %v986 = vsub.f32 1.5, %v985
        %v987 = vmul.f32 %v982, %v986
        %vm988 = vweird.f32 %v981
        %vm989 = vweird.f32 %v982
        %vm990 = vmor %vm988, %vm989
        %v991 = vsel %vm990, %v982, %v987
        %v992 = vmul.f32 %v975, %v991
        %v994 = vperm.slane %v969, 0
        %v996 = vmul.f32 %v992, %v994
        %v998 = vperm.slane %v970, 0
        %v1000 = vadd.f32 %v996, %v998
        %v1001 = vpack.c.bf16 %v1000, %v1000
        %v1002 = vld [vmem:[%s587] sm:$0xf]
        %v1003 = vld [vmem:[%s587 + $0x4] sm:$0xf]
        %v1004 = vld [vmem:[%s587 + $0x8] sm:$0xf]
        %v1005 = vld [vmem:[%s587 + $0xc] sm:$0xf]
        %v1006 = vld [vmem:[%s590] sm:$0x1]
        %v1008 = vperm.slane %v1006, 0
        %v1014 = vunpack.c.l.b16 %v1002
        %v1015 = vunpack.c.l.b16 %v1003
        %v1016 = vunpack.c.l.b16 %v1004
        %v1017 = vunpack.c.l.b16 %v1005
        %v1018 = vpack.c.b16 %v1015, %v1014
        %v1019 = vpack.c.b16 %v1017, %v1016
        %v1023 = vsel %vm610, %v1001, 0
        %1025 = vmatpush.bf16.msra.mxu0 0
        %1026 = vmatpush.bf16.msra.mxu0 0
        %1027 = vmatpush.bf16.msra.mxu0 0
        %1028 = vmatpush.bf16.msra.mxu0 0
        %1029 = vmatpush.bf16.msra.mxu0 0
        %1030 = vmatpush.bf16.msra.mxu0 0
        %1031 = vmatpush.bf16.msra.mxu0 %v1019
        %1032 = vmatpush.bf16.msra.mxu0 %v1018
        %1033 = vmatmul.bf16.gmra.mxu0 %v1023
        %v1034 = vpop.f32.mrf.mxu0
        %v1035 = vadd.f32 %v1008, %v1034
        %v1036 = vpop.f32.mrf.mxu0
        %1037 = vdwg.mxu0
        %v1038 = vmul.f32 %v1035, 0.70710677
        %v1039 = vmax.f32 %v1038, -4.0
        %v1040 = vmin.f32 %v1039, 4.0
        %v1041 = vmul.f32 %v1040, %v1040
        %v1042 = vmul.f32 %v1041, -2.7261424e-10
        %v1043 = vadd.f32 %v1042, 2.7706815e-08
        %v1044 = vmul.f32 %v1043, %v1041
        %v1045 = vadd.f32 %v1044, -2.101024e-06
        %v1046 = vmul.f32 %v1045, %v1041
        %v1047 = vadd.f32 %v1046, -5.6925062e-05
        %v1048 = vmul.f32 %v1047, %v1041
        %v1049 = vadd.f32 %v1048, -0.00073499064
        %v1050 = vmul.f32 %v1049, %v1041
        %v1051 = vadd.f32 %v1050, -0.0029546
        %v1052 = vmul.f32 %v1051, %v1041
        %v1053 = vadd.f32 %v1052, -0.016096033
        %v1054 = vmul.f32 %v1053, %v1040
        %v1055 = vmul.f32 %v1041, -1.45660715e-05
        %v1056 = vadd.f32 %v1055, -0.00021337405
        %v1057 = vmul.f32 %v1056, %v1041
        %v1058 = vadd.f32 %v1057, -0.001682827
        %v1059 = vmul.f32 %v1058, %v1041
        %v1060 = vadd.f32 %v1059, -0.0073733293
        %v1061 = vmul.f32 %v1060, %v1041
        %v1062 = vadd.f32 %v1061, -0.014264739
        %v1063 = vrcp.pop %v1062
        %v1064 = vmul.f32 %v1054, %v1063
        %v1065 = vadd.f32 %v1064, 1.0
        %v1066 = vmul.f32 %v1035, %v1065
        %v1067 = vpack.c.bf16 %v1066, %v1066
        %v1068 = vld [vmem:[%s595] sm:$0xf]
        %v1069 = vld [vmem:[%s595 + $0x4] sm:$0xf]
        %v1070 = vld [vmem:[%s595 + $0x8] sm:$0xf]
        %v1071 = vld [vmem:[%s595 + $0xc] sm:$0xf]
        %v1072 = vld [vmem:[%s595 + $0x10] sm:$0xf]
        %v1073 = vld [vmem:[%s595 + $0x14] sm:$0xf]
        %v1074 = vld [vmem:[%s595 + $0x18] sm:$0xf]
        %v1075 = vld [vmem:[%s595 + $0x1c] sm:$0xf]
        %v1076 = vld [vmem:[%s595 + $0x20] sm:$0xf]
        %v1077 = vld [vmem:[%s595 + $0x24] sm:$0xf]
        %v1078 = vld [vmem:[%s595 + $0x28] sm:$0xf]
        %v1079 = vld [vmem:[%s595 + $0x2c] sm:$0xf]
        %v1080 = vld [vmem:[%s595 + $0x30] sm:$0xf]
        %v1081 = vld [vmem:[%s595 + $0x34] sm:$0xf]
        %v1082 = vld [vmem:[%s595 + $0x38] sm:$0xf]
        %v1083 = vld [vmem:[%s595 + $0x3c] sm:$0xf]
        %v1084 = vld [vmem:[%s598] sm:$0x1]
        %v1086 = vperm.slane %v1084, 0
        %v1104 = vunpack.c.l.b16 %v1068
        %v1105 = vunpack.c.l.b16 %v1069
        %v1106 = vunpack.c.l.b16 %v1070
        %v1107 = vunpack.c.l.b16 %v1071
        %v1108 = vunpack.c.l.b16 %v1072
        %v1109 = vunpack.c.l.b16 %v1073
        %v1110 = vunpack.c.l.b16 %v1074
        %v1111 = vunpack.c.l.b16 %v1075
        %v1112 = vunpack.c.l.b16 %v1076
        %v1113 = vunpack.c.l.b16 %v1077
        %v1114 = vunpack.c.l.b16 %v1078
        %v1115 = vunpack.c.l.b16 %v1079
        %v1116 = vunpack.c.l.b16 %v1080
        %v1117 = vunpack.c.l.b16 %v1081
        %v1118 = vunpack.c.l.b16 %v1082
        %v1119 = vunpack.c.l.b16 %v1083
        %v1120 = vpack.c.b16 %v1105, %v1104
        %v1121 = vpack.c.b16 %v1107, %v1106
        %v1122 = vpack.c.b16 %v1109, %v1108
        %v1123 = vpack.c.b16 %v1111, %v1110
        %v1124 = vpack.c.b16 %v1113, %v1112
        %v1125 = vpack.c.b16 %v1115, %v1114
        %v1126 = vpack.c.b16 %v1117, %v1116
        %v1127 = vpack.c.b16 %v1119, %v1118
        %1136 = vmatpush.bf16.msra.mxu0 %v1127
        %1137 = vmatpush.bf16.msra.mxu0 %v1126
        %1138 = vmatpush.bf16.msra.mxu0 %v1125
        %1139 = vmatpush.bf16.msra.mxu0 %v1124
        %1140 = vmatpush.bf16.msra.mxu0 %v1123
        %1141 = vmatpush.bf16.msra.mxu0 %v1122
        %1142 = vmatpush.bf16.msra.mxu0 %v1121
        %1143 = vmatpush.bf16.msra.mxu0 %v1120
        %1144 = vmatmul.bf16.gmra.mxu0 %v1067
        %v1145 = vpop.f32.mrf.mxu0
        %v1146 = vadd.f32 %v1086, %v1145
        %v1147 = vpop.f32.mrf.mxu0
        %1148 = vdwg.mxu0
        %v1149 = vadd.f32 %v1000, %v1146
        %1150 = vst.msk [vmem:[#allocation2] sm:$0xff] %vm610, %v1149
        %p1151 = scmp.eq.s32.totalorder %s31, 1
        // Predicated region
        $region73: #{transformer_layer_forward.1} parent=67 // pred_check
          %p1152 = pneg %p1151
        $region74: #{transformer_layer_forward.1} parent=67 // pred_check_branch
          %1154 = sbr.rel (%p1152) target = $region76
        $region75: #{transformer_layer_forward.1} parent=67 // pred_region
          %1155 = vst.msk [vmem:[%s553] sm:$0xff] %vm610, %v1149
        $region76: #{transformer_layer_forward.1} parent=67 // pred_fallthru
          _
        %s1156 = sand.u32 %s358, 1
        %s1157 = scalar_lea.sflag [#allocation5], %s1156
        %s1158 = sand.u32 %s358, 1
        %s1159 = smul.addr %s1158, 8
        %s1160 = scalar_lea.vmem [#allocation4], %s1159
        // Predicated region
        $region77: #{transformer_layer_forward.1} parent=67 // pred_check
          %p1161 = pneg %p368
        $region78: #{transformer_layer_forward.1} parent=67 // pred_check_branch
          %1163 = sbr.rel (%p1161) target = $region80
        $region79: #{transformer_layer_forward.1} parent=67 // pred_region
          %1165 = vsyncadd %s1157, 0
          %s1166 = smul.addr %s30, 8
          %s1167 = scalar_lea.hbm %s12, %s1166
          %s1169 = sshll.u32 %s1160, 4
          %s1170 = int_to_ptr.vmem [resolvable:$true] %s1169
          %s1171 = sshll.u32 %s1167, 4
          %s1172 = int_to_ptr.hbm [resolvable:$true] %s1171
          %1174 = dma.vmem_to_hbm [thread:$0]  %s1170, 128, %s1172, %s1157
        $region80: #{transformer_layer_forward.1} parent=67 // pred_fallthru
          _
      $region68: #{transformer_layer_forward.1} parent=5 // pred_fallthru
        _
      %p1175 = scmp.le.s32.totalorder 2, %s21
      // Predicated region
      $region81: #{transformer_layer_forward.1} parent=5 // pred_check
        %p1176 = pneg %p1175
      $region82: #{transformer_layer_forward.1} parent=5 // pred_check_branch
        %1178 = sbr.rel (%p1176) target = $region84
      $region83: #{transformer_layer_forward.1} parent=5 // pred_region
        %s1179 = ssub.s32 %s21, 2
        // Predicated region
        $region85: #{transformer_layer_forward.1} parent=83 // pred_check
          %p1180 = pneg %p374
        $region86: #{transformer_layer_forward.1} parent=83 // pred_check_branch
          %1182 = sbr.rel (%p1180) target = $region88
        $region87: #{transformer_layer_forward.1} parent=83 // pred_region
          %s1183 = sand.u32 %s359, 1
          %s1184 = scalar_lea.sflag [#allocation5], %s1183
          %s1185 = sand.u32 %s359, 1
          %s1186 = smul.addr %s1185, 8
          %s1187 = scalar_lea.vmem [#allocation4], %s1186
          %1189 = dma.done %s1184, 128
        $region88: #{transformer_layer_forward.1} parent=83 // pred_fallthru
          _
      $region84: #{transformer_layer_forward.1} parent=5 // pred_fallthru
        _
    $region6: #{transformer_layer_forward.1} parent=1 // loop_footer
      %s25 = sadd.s32 1, %s21
    $region7: #{transformer_layer_forward.1} parent=1 // loop_footer_branch
      %20 = sbr.rel target = $region3
    $region8: #{transformer_layer_forward.1} parent=1 // loop_exit
      _
    %1190 = vsyncpa [#allocation5], 1
    %s1191 = scalar_lea.sflag [#allocation5], 1
    %1192 = vsyncpa %s1191, 1

</llo_original>
